<compile_context>
chip_gen: v7x
topology: tpu7x:2x2x1
jax: 0.10.0
libtpu: 0.0.40
codegen_flags: <defaults>
</compile_context>

<pallas_src>
import numpy as np
import jax
import jax.numpy as jnp
from jax import lax
from jax.experimental import pallas as pl
from jax.experimental.pallas import tpu as pltpu


def _round_up(x, m):
    return (x + m - 1) // m * m


# ----------------------------------------------------------------------------
# Pack weights / per-batch effective biases into single slabs
# ----------------------------------------------------------------------------
def _prep_packed(params, cond, cfg):
    """Fold cond into per-batch biases, permute pixel-shuffle channels, and pack
    all layer weights into one (R, cin_max) slab and all per-batch effective
    biases into one (B, cout_max, L) slab.

    Returns (w_slab, b_slab, meta); meta[l] = (row_off, k, c_in, c_out, c_pad),
    all Python ints (static for the kernel)."""
    c_h = cfg['c_h']
    B = cond.shape[0]
    layers = []  # (w (k, c_in, c_out), b_eff (B, c_out))

    def plain(w, b):
        _k, _cin, cout = w.shape
        # (plain biases are duplicated across B inside the tiny slab — a few
        #  hundred bytes — to keep a single per-batch bias DMA.)
        layers.append((w, jnp.broadcast_to(b.reshape(1, cout), (B, cout))))

    def conded(w, b, perm=None):  # input was [x ; cond], cond time-constant
        _k, _cin, cout = w.shape
        wx = w[:, :c_h, :]                              # (k, c_h, cout)
        wc = jnp.sum(w[:, c_h:, :], axis=0)             # (c_cond, cout)
        beff = b.reshape(1, cout) + cond @ wc           # (B, cout)
        if perm is not None:
            wx = wx[:, :, perm]
            beff = beff[:, perm]
        layers.append((wx, beff))

    plain(params['in_w'], params['in_b'])
    for l in range(cfg['n_conv_blocks']):
        conded(params['first_w'][l], params['first_b'][l])
        up = cfg['upsample'][l]
        perm = None
        if up > 1:
            # new channel s*c_h + ch  <-  old channel ch*up + s
            # (makes each pixel-shuffle plane a contiguous sublane slice)
            perm = np.array([ch * up + s for s in range(up) for ch in range(c_h)],
                            dtype=np.int32)
        conded(params['second_w'][l], params['second_b'][l], perm)
    for l in range(cfg['n_dense_blocks']):
        conded(params['dense1_w'][l], params['dense1_b'][l])
        conded(params['dense2_w'][l], params['dense2_b'][l])
    plain(params['out_w'], params['out_b'])

    L = len(layers)
    cin_max = _round_up(max(w.shape[1] for w, _ in layers), 8)
    cout_max = _round_up(max(w.shape[2] for w, _ in layers), 8)

    meta = []
    blocks = []
    row_off = 0
    for (w, _beff) in layers:
        k, cin, cout = w.shape
        cpad = _round_up(cout, 8)
        meta.append((row_off, k, cin, cout, cpad))
        for j in range(k):
            blk = jnp.zeros((cpad, cin_max), jnp.float32)
            blk = blk.at[:cout, :cin].set(jnp.transpose(w[j]))   # (cout, cin)
            blocks.append(blk)
        row_off += k * cpad
    w_slab = jnp.concatenate(blocks, axis=0)                      # (R, cin_max)

    b_slab = jnp.zeros((B, cout_max, L), jnp.float32)
    for l, (_w, beff) in enumerate(layers):
        cout = beff.shape[1]
        b_slab = b_slab.at[:, :cout, l].set(beff)
    return w_slab, b_slab, meta


# ----------------------------------------------------------------------------
# Fused decoder kernel (one batch element per grid step, channels-on-sublane)
# ----------------------------------------------------------------------------
def _make_fused_kernel(cfg, meta):
    c_h = cfg['c_h']
    n_conv = cfg['n_conv_blocks']
    n_dense = cfg['n_dense_blocks']
    ups = tuple(cfg['upsample'])
    act_name = cfg['act']
    slope = 0.01  # PyTorch LeakyReLU default

    def _act(y):
        if act_name == 'lrelu':
            return jnp.where(y >= 0.0, y, slope * y)
        return jnp.maximum(y, 0.0)  # 'relu' and fallback

    def kernel(x_ref, w_ref, b_ref, o_ref):
        b_all = b_ref[0]                                  # (cout_max, L)

        # Constant 0/1 time-shift matrices (reflect boundary), built once per
        # (T, offset) from 2-D iota; applying them is an MXU matmul (huge slack).
        shift_cache = {}

        def shift_mat(T, d):
            key = (T, d)
            if key not in shift_cache:
                rows = lax.broadcasted_iota(jnp.int32, (T, T), 0)
                cols = lax.broadcasted_iota(jnp.int32, (T, T), 1)
                src = cols + d
                src = jnp.where(src < 0, -src, src)
                src = jnp.where(src >= T, 2 * T - 2 - src, src)
                shift_cache[key] = (rows == src).astype(jnp.float32)
            return shift_cache[key]

        def interleave_mat(T, up, s):
            # P[w, up*w + s] = 1  -> scatters plane s into interleaved time
            rows = lax.broadcasted_iota(jnp.int32, (T, T * up), 0)
            cols = lax.broadcasted_iota(jnp.int32, (T, T * up), 1)
            return (cols == up * rows + s).astype(jnp.float32)

        def conv(xv, layer_idx, do_act):
            row_off, kk, cin, cout, cpad = meta[layer_idx]
            T = xv.shape[1]
            acc = jnp.zeros((cout, T), jnp.float32)
            for j in range(kk):
                d = j - kk // 2                          # reflect-pad tap offset
                r0 = row_off + j * cpad                  # sublane-aligned (mult of 8)
                wj = w_ref[r0:r0 + cout, :cin]           # (cout, cin) static slice
                y = jnp.dot(wj, xv, preferred_element_type=jnp.float32)   # (cout, T)
                if d != 0:
                    y = jnp.dot(y, shift_mat(T, d), preferred_element_type=jnp.float32)
                acc = acc + y
            acc = acc + b_all[:cout, layer_idx:layer_idx + 1]   # bias, lane-broadcast
            return _act(acc) if do_act else acc

        li = [0]

        def nxt():
            i = li[0]
            li[0] += 1
            return i

        x = x_ref[0].astype(jnp.float32)                 # (c_in, T0)
        out = conv(x, nxt(), False)                      # in_conv (k=1, no act)

        for l in range(n_conv):
            y = conv(out, nxt(), True)                   # first conv (+cond in bias)
            y = conv(y, nxt(), True)                     # second conv (planes permuted)
            up = ups[l]
            if up > 1:
                # Pixel shuffle fused with the nearest-upsample residual.
                # TODO(synk): reference hardcodes residual scale_factor=2, so only
                # up in {1, 2} is supported (checked in the wrapper).
                T = out.shape[1]
                new_out = None
                for s in range(up):
                    plane = y[s * c_h:(s + 1) * c_h, :] + out        # residual folded
                    term = jnp.dot(plane, interleave_mat(T, up, s),
                                   preferred_element_type=jnp.float32)
                    new_out = term if new_out is None else new_out + term
                out = new_out
            else:
                out = y + out

        for _ in range(n_dense):
            y = conv(out, nxt(), True)
            y = conv(y, nxt(), True)
            out = out + y

        out = conv(out, nxt(), False)                    # out_conv (k=1, no act)
        o_ref[0] = out.astype(o_ref.dtype)

    return kernel


# ----------------------------------------------------------------------------
# Wrapper: one pallas_call, NCW in / NCW out, no transposes
# ----------------------------------------------------------------------------
def decoder_forward(params, x_ncw, cond, cfg):
    # TODO(synk): dropout omitted (eval-mode identity; only active in training).
    B, c_in, T0 = x_ncw.shape
    c_out = cfg['c_out']
    for up in cfg['upsample']:
        assert up in (1, 2), "reference Decoder only supports upsample factors 1 or 2"
    t_scale = int(np.prod(cfg['upsample']))
    T_out = T0 * t_scale

    w_slab, b_slab, meta = _prep_packed(params, cond, cfg)
    kernel = _make_fused_kernel(cfg, meta)

    out = pl.pallas_call(
        kernel,
        out_shape=jax.ShapeDtypeStruct((B, c_out, T_out), x_ncw.dtype),
        grid=(B,),
        in_specs=[
            pl.BlockSpec((1, c_in, T0), lambda i: (i, 0, 0)),            # per-batch input
            pl.BlockSpec(w_slab.shape, lambda i: (0, 0)),                # resident weight slab
            pl.BlockSpec((1,) + b_slab.shape[1:], lambda i: (i, 0, 0)),  # per-batch bias slab
        ],
        out_specs=pl.BlockSpec((1, c_out, T_out), lambda i: (i, 0, 0)),
        compiler_params=pltpu.CompilerParams(dimension_semantics=("parallel",)),
    )(x_ncw, w_slab, b_slab)
    return out


# ----------------------------------------------------------------------------
# Pure-JAX reference (mirrors PyTorch NCW semantics) for validation
# ----------------------------------------------------------------------------
def _ref_conv1d_ncw(x, w, b):
    k = w.shape[0]
    pad = (k // 2, k // 2 - 1) if k % 2 == 0 else (k // 2, k // 2)
    xp = jnp.pad(x, ((0, 0), (0, 0), pad), mode='reflect') if sum(pad) > 0 else x
    T = x.shape[-1]
    out = b[None, :, None]
    for j in range(k):
        out = out + jnp.einsum('bct,co->bot', xp[:, :, j:j + T], w[j])
    return out


def _ref_act(x, act, slope=0.01):
    if act == 'lrelu':
        return jnp.where(x >= 0.0, x, slope * x)
    return jnp.maximum(x, 0.0)


def ref_decoder(params, x, cond, cfg):
    def append_cond(x, cond):
        c = jnp.broadcast_to(cond[:, :, None], (cond.shape[0], cond.shape[1], x.shape[-1]))
        return jnp.concatenate([x, c], axis=1)
    out = _ref_conv1d_ncw(x, params['in_w'], params['in_b'])
    for l in range(cfg['n_conv_blocks']):
        y = append_cond(out, cond)
        y = _ref_act(_ref_conv1d_ncw(y, params['first_w'][l], params['first_b'][l]), cfg['act'])
        y = append_cond(y, cond)
        y = _ref_act(_ref_conv1d_ncw(y, params['second_w'][l], params['second_b'][l]), cfg['act'])
        up = cfg['upsample'][l]
        if up > 1:
            B, C, W = y.shape
            ch = C // up
            y = y.reshape(B, ch, up, W).transpose(0, 1, 3, 2).reshape(B, ch, W * up)
            out = y + jnp.repeat(out, 2, axis=2)
        else:
            out = y + out
    for l in range(cfg['n_dense_blocks']):
        y = append_cond(out, cond)
        y = _ref_act(_ref_conv1d_ncw(y, params['dense1_w'][l], params['dense1_b'][l]), cfg['act'])
        y = append_cond(y, cond)
        y = _ref_act(_ref_conv1d_ncw(y, params['dense2_w'][l], params['dense2_b'][l]), cfg['act'])
        out = out + y
    return _ref_conv1d_ncw(out, params['out_w'], params['out_b'])


# ----------------------------------------------------------------------------
# Deterministic parameter initialization (weights stored as (k, C_in, C_out))
# ----------------------------------------------------------------------------
def init_params(key, cfg):
    n_keys = 4 + 4 * cfg['n_conv_blocks'] + 4 * cfg['n_dense_blocks']
    ks = list(jax.random.split(key, n_keys))

    def conv(cin, cout, k):
        kw, kb = ks.pop(), ks.pop()
        scale = 1.0 / np.sqrt(cin * k)
        w = jax.random.uniform(kw, (k, cin, cout), jnp.float32, -scale, scale)
        b = jax.random.uniform(kb, (cout,), jnp.float32, -scale, scale)
        return w, b

    p = {}
    p['in_w'], p['in_b'] = conv(cfg['c_in'], cfg['c_h'], 1)
    p['first_w'], p['first_b'], p['second_w'], p['second_b'] = [], [], [], []
    for l in range(cfg['n_conv_blocks']):
        w, b = conv(cfg['c_h'] + cfg['c_cond'], cfg['c_h'], cfg['kernel_size'])
        p['first_w'].append(w); p['first_b'].append(b)
        w, b = conv(cfg['c_h'] + cfg['c_cond'], cfg['c_h'] * cfg['upsample'][l], cfg['kernel_size'])
        p['second_w'].append(w); p['second_b'].append(b)
    p['dense1_w'], p['dense1_b'], p['dense2_w'], p['dense2_b'] = [], [], [], []
    for _ in range(cfg['n_dense_blocks']):
        w, b = conv(cfg['c_h'] + cfg['c_cond'], cfg['c_h'], 1)
        p['dense1_w'].append(w); p['dense1_b'].append(b)
        w, b = conv(cfg['c_h'] + cfg['c_cond'], cfg['c_h'], 1)
        p['dense2_w'].append(w); p['dense2_b'].append(b)
    p['out_w'], p['out_b'] = conv(cfg['c_h'], cfg['c_out'], 1)
    return p


if __name__ == "__main__":
    cfg = dict(c_in=4, c_cond=4, c_h=8, c_out=4, kernel_size=3,
               n_conv_blocks=2, upsample=(2, 1), n_dense_blocks=2,
               act='relu', dropout_rate=0.0)
    key = jax.random.PRNGKey(0)
    kp, kx, kc = jax.random.split(key, 3)
    params = init_params(kp, cfg)

    B, T = 2, 16
    x = jax.random.normal(kx, (B, cfg['c_in'], T), jnp.float32)       # PyTorch NCW input
    cond = jax.random.normal(kc, (B, cfg['c_cond']), jnp.float32)

    fwd = jax.jit(lambda p, xx, cc: decoder_forward(p, xx, cc, cfg))
    out = fwd(params, x, cond)
    out = jax.block_until_ready(out)

    ref = ref_decoder(params, x, cond, cfg)
    assert out.shape == (B, cfg['c_out'], T * 2), out.shape          # one 2x upsample block
    np.testing.assert_allclose(np.asarray(out), np.asarray(ref), rtol=1e-4, atol=1e-4)
    print("KERNEL_OK")
</pallas_src>

<mosaic_0001>
module attributes {stable_mosaic.version = 11 : i64} {
  func.func @kernel(%arg0: i32, %arg1: memref<1x4x16xf32, #tpu.memory_space<vmem>>, %arg2: memref<168x8xf32, #tpu.memory_space<vmem>>, %arg3: memref<1x16x10xf32, #tpu.memory_space<vmem>>, %arg4: memref<1x4x32xf32, #tpu.memory_space<vmem>>) attributes {dimension_semantics = [#tpu.dimension_semantics<parallel>], iteration_bounds = array<i64: 2>, scalar_prefetch = 0 : i64, scratch_operands = 0 : i64, tpu.core_type = #tpu.core_type<tc>, window_params = [{transform_indices = @transform_0, window_bounds = array<i64: 1, 4, 16>}, {pipeline_mode = #tpu.pipeline_mode<synchronous>, transform_indices = @transform_1, window_bounds = array<i64: 168, 8>}, {transform_indices = @transform_2, window_bounds = array<i64: 1, 16, 10>}, {transform_indices = @transform_3, window_bounds = array<i64: 1, 4, 32>}]} {
    %c0 = arith.constant 0 : index
    %c0_0 = arith.constant 0 : index
    %c0_1 = arith.constant 0 : index
    %0 = vector.load %arg3[%c0, %c0_0, %c0_1] : memref<1x16x10xf32, #tpu.memory_space<vmem>>, vector<1x16x10xf32>
    %1 = vector.shape_cast %0 : vector<1x16x10xf32> to vector<16x10xf32>
    %c0_2 = arith.constant 0 : index
    %c0_3 = arith.constant 0 : index
    %c0_4 = arith.constant 0 : index
    %2 = vector.load %arg1[%c0_2, %c0_3, %c0_4] : memref<1x4x16xf32, #tpu.memory_space<vmem>>, vector<1x4x16xf32>
    %3 = vector.shape_cast %2 : vector<1x4x16xf32> to vector<4x16xf32>
    %cst = arith.constant 0.000000e+00 : f32
    %4 = vector.broadcast %cst : f32 to vector<8x16xf32>
    %c0_5 = arith.constant 0 : index
    %c0_6 = arith.constant 0 : index
    %5 = vector.load %arg2[%c0_5, %c0_6] : memref<168x8xf32, #tpu.memory_space<vmem>>, vector<8x4xf32>
    %cst_7 = arith.constant dense<0.000000e+00> : vector<8x16xf32>
    %6 = tpu.matmul %5, %3, %cst_7 {dimension_numbers = #tpu.dot_dimension_numbers<[1], [0], [0], [1], [0, 0, 1, 1], [], []>} : vector<8x4xf32>, vector<4x16xf32>, vector<8x16xf32> -> vector<8x16xf32>
    %7 = arith.addf %4, %6 : vector<8x16xf32>
    %8 = vector.extract_strided_slice %1 {offsets = [0, 0], sizes = [8, 1], strides = [1, 1]} : vector<16x10xf32> to vector<8x1xf32>
    %9 = vector.broadcast %8 : vector<8x1xf32> to vector<8x16xf32>
    %10 = arith.addf %7, %9 : vector<8x16xf32>
    %cst_8 = arith.constant 0.000000e+00 : f32
    %11 = vector.broadcast %cst_8 : f32 to vector<8x16xf32>
    %c8 = arith.constant 8 : index
    %c0_9 = arith.constant 0 : index
    %12 = vector.load %arg2[%c8, %c0_9] : memref<168x8xf32, #tpu.memory_space<vmem>>, vector<8x8xf32>
    %cst_10 = arith.constant dense<0.000000e+00> : vector<8x16xf32>
    %13 = tpu.matmul %12, %10, %cst_10 {dimension_numbers = #tpu.dot_dimension_numbers<[1], [0], [0], [1], [0, 0, 1, 1], [], []>} : vector<8x8xf32>, vector<8x16xf32>, vector<8x16xf32> -> vector<8x16xf32>
    %14 = tpu.iota {dimensions = array<i32: 0>} : vector<16x16xi32>
    %15 = tpu.iota {dimensions = array<i32: 1>} : vector<16x16xi32>
    %c-1_i32 = arith.constant -1 : i32
    %16 = vector.broadcast %c-1_i32 : i32 to vector<16x16xi32>
    %17 = arith.addi %15, %16 : vector<16x16xi32>
    %c0_i32 = arith.constant 0 : i32
    %18 = vector.broadcast %c0_i32 : i32 to vector<16x16xi32>
    %19 = arith.cmpi slt, %17, %18 : vector<16x16xi32>
    %c0_i32_11 = arith.constant 0 : i32
    %20 = vector.broadcast %c0_i32_11 : i32 to vector<16x16xi32>
    %21 = arith.subi %20, %17 : vector<16x16xi32>
    %22 = arith.select %19, %21, %17 : vector<16x16xi1>, vector<16x16xi32>
    %c16_i32 = arith.constant 16 : i32
    %23 = vector.broadcast %c16_i32 : i32 to vector<16x16xi32>
    %24 = arith.cmpi sge, %22, %23 : vector<16x16xi32>
    %c30_i32 = arith.constant 30 : i32
    %25 = vector.broadcast %c30_i32 : i32 to vector<16x16xi32>
    %26 = arith.subi %25, %22 : vector<16x16xi32>
    %27 = arith.select %24, %26, %22 : vector<16x16xi1>, vector<16x16xi32>
    %28 = arith.cmpi eq, %14, %27 : vector<16x16xi32>
    %29 = arith.extui %28 : vector<16x16xi1> to vector<16x16xi32>
    %30 = arith.sitofp %29 : vector<16x16xi32> to vector<16x16xf32>
    %cst_12 = arith.constant dense<0.000000e+00> : vector<8x16xf32>
    %31 = tpu.matmul %13, %30, %cst_12 {dimension_numbers = #tpu.dot_dimension_numbers<[1], [0], [0], [1], [0, 0, 1, 1], [], []>} : vector<8x16xf32>, vector<16x16xf32>, vector<8x16xf32> -> vector<8x16xf32>
    %32 = arith.addf %11, %31 : vector<8x16xf32>
    %c16 = arith.constant 16 : index
    %c0_13 = arith.constant 0 : index
    %33 = vector.load %arg2[%c16, %c0_13] : memref<168x8xf32, #tpu.memory_space<vmem>>, vector<8x8xf32>
    %cst_14 = arith.constant dense<0.000000e+00> : vector<8x16xf32>
    %34 = tpu.matmul %33, %10, %cst_14 {dimension_numbers = #tpu.dot_dimension_numbers<[1], [0], [0], [1], [0, 0, 1, 1], [], []>} : vector<8x8xf32>, vector<8x16xf32>, vector<8x16xf32> -> vector<8x16xf32>
    %35 = arith.addf %32, %34 : vector<8x16xf32>
    %c24 = arith.constant 24 : index
    %c0_15 = arith.constant 0 : index
    %36 = vector.load %arg2[%c24, %c0_15] : memref<168x8xf32, #tpu.memory_space<vmem>>, vector<8x8xf32>
    %cst_16 = arith.constant dense<0.000000e+00> : vector<8x16xf32>
    %37 = tpu.matmul %36, %10, %cst_16 {dimension_numbers = #tpu.dot_dimension_numbers<[1], [0], [0], [1], [0, 0, 1, 1], [], []>} : vector<8x8xf32>, vector<8x16xf32>, vector<8x16xf32> -> vector<8x16xf32>
    %38 = tpu.iota {dimensions = array<i32: 0>} : vector<16x16xi32>
    %39 = tpu.iota {dimensions = array<i32: 1>} : vector<16x16xi32>
    %c1_i32 = arith.constant 1 : i32
    %40 = vector.broadcast %c1_i32 : i32 to vector<16x16xi32>
    %41 = arith.addi %39, %40 : vector<16x16xi32>
    %c0_i32_17 = arith.constant 0 : i32
    %42 = vector.broadcast %c0_i32_17 : i32 to vector<16x16xi32>
    %43 = arith.cmpi slt, %41, %42 : vector<16x16xi32>
    %c0_i32_18 = arith.constant 0 : i32
    %44 = vector.broadcast %c0_i32_18 : i32 to vector<16x16xi32>
    %45 = arith.subi %44, %41 : vector<16x16xi32>
    %46 = arith.select %43, %45, %41 : vector<16x16xi1>, vector<16x16xi32>
    %c16_i32_19 = arith.constant 16 : i32
    %47 = vector.broadcast %c16_i32_19 : i32 to vector<16x16xi32>
    %48 = arith.cmpi sge, %46, %47 : vector<16x16xi32>
    %c30_i32_20 = arith.constant 30 : i32
    %49 = vector.broadcast %c30_i32_20 : i32 to vector<16x16xi32>
    %50 = arith.subi %49, %46 : vector<16x16xi32>
    %51 = arith.select %48, %50, %46 : vector<16x16xi1>, vector<16x16xi32>
    %52 = arith.cmpi eq, %38, %51 : vector<16x16xi32>
    %53 = arith.extui %52 : vector<16x16xi1> to vector<16x16xi32>
    %54 = arith.sitofp %53 : vector<16x16xi32> to vector<16x16xf32>
    %cst_21 = arith.constant dense<0.000000e+00> : vector<8x16xf32>
    %55 = tpu.matmul %37, %54, %cst_21 {dimension_numbers = #tpu.dot_dimension_numbers<[1], [0], [0], [1], [0, 0, 1, 1], [], []>} : vector<8x16xf32>, vector<16x16xf32>, vector<8x16xf32> -> vector<8x16xf32>
    %56 = arith.addf %35, %55 : vector<8x16xf32>
    %57 = vector.extract_strided_slice %1 {offsets = [0, 1], sizes = [8, 1], strides = [1, 1]} : vector<16x10xf32> to vector<8x1xf32>
    %58 = vector.broadcast %57 : vector<8x1xf32> to vector<8x16xf32>
    %59 = arith.addf %56, %58 : vector<8x16xf32>
    %cst_22 = arith.constant 0.000000e+00 : f32
    %60 = vector.broadcast %cst_22 : f32 to vector<8x16xf32>
    %61 = arith.maximumf %59, %60 : vector<8x16xf32>
    %cst_23 = arith.constant 0.000000e+00 : f32
    %62 = vector.broadcast %cst_23 : f32 to vector<16x16xf32>
    %c32 = arith.constant 32 : index
    %c0_24 = arith.constant 0 : index
    %63 = vector.load %arg2[%c32, %c0_24] : memref<168x8xf32, #tpu.memory_space<vmem>>, vector<16x8xf32>
    %cst_25 = arith.constant dense<0.000000e+00> : vector<16x16xf32>
    %64 = tpu.matmul %63, %61, %cst_25 {dimension_numbers = #tpu.dot_dimension_numbers<[1], [0], [0], [1], [0, 0, 1, 1], [], []>} : vector<16x8xf32>, vector<8x16xf32>, vector<16x16xf32> -> vector<16x16xf32>
    %cst_26 = arith.constant dense<0.000000e+00> : vector<16x16xf32>
    %65 = tpu.matmul %64, %30, %cst_26 {dimension_numbers = #tpu.dot_dimension_numbers<[1], [0], [0], [1], [0, 0, 1, 1], [], []>} : vector<16x16xf32>, vector<16x16xf32>, vector<16x16xf32> -> vector<16x16xf32>
    %66 = arith.addf %62, %65 : vector<16x16xf32>
    %c48 = arith.constant 48 : index
    %c0_27 = arith.constant 0 : index
    %67 = vector.load %arg2[%c48, %c0_27] : memref<168x8xf32, #tpu.memory_space<vmem>>, vector<16x8xf32>
    %cst_28 = arith.constant dense<0.000000e+00> : vector<16x16xf32>
    %68 = tpu.matmul %67, %61, %cst_28 {dimension_numbers = #tpu.dot_dimension_numbers<[1], [0], [0], [1], [0, 0, 1, 1], [], []>} : vector<16x8xf32>, vector<8x16xf32>, vector<16x16xf32> -> vector<16x16xf32>
    %69 = arith.addf %66, %68 : vector<16x16xf32>
    %c64 = arith.constant 64 : index
    %c0_29 = arith.constant 0 : index
    %70 = vector.load %arg2[%c64, %c0_29] : memref<168x8xf32, #tpu.memory_space<vmem>>, vector<16x8xf32>
    %cst_30 = arith.constant dense<0.000000e+00> : vector<16x16xf32>
    %71 = tpu.matmul %70, %61, %cst_30 {dimension_numbers = #tpu.dot_dimension_numbers<[1], [0], [0], [1], [0, 0, 1, 1], [], []>} : vector<16x8xf32>, vector<8x16xf32>, vector<16x16xf32> -> vector<16x16xf32>
    %cst_31 = arith.constant dense<0.000000e+00> : vector<16x16xf32>
    %72 = tpu.matmul %71, %54, %cst_31 {dimension_numbers = #tpu.dot_dimension_numbers<[1], [0], [0], [1], [0, 0, 1, 1], [], []>} : vector<16x16xf32>, vector<16x16xf32>, vector<16x16xf32> -> vector<16x16xf32>
    %73 = arith.addf %69, %72 : vector<16x16xf32>
    %74 = vector.extract_strided_slice %1 {offsets = [0, 2], sizes = [16, 1], strides = [1, 1]} : vector<16x10xf32> to vector<16x1xf32>
    %75 = vector.broadcast %74 : vector<16x1xf32> to vector<16x16xf32>
    %76 = arith.addf %73, %75 : vector<16x16xf32>
    %cst_32 = arith.constant 0.000000e+00 : f32
    %77 = vector.broadcast %cst_32 : f32 to vector<16x16xf32>
    %78 = arith.maximumf %76, %77 : vector<16x16xf32>
    %79 = vector.extract_strided_slice %78 {offsets = [0, 0], sizes = [8, 16], strides = [1, 1]} : vector<16x16xf32> to vector<8x16xf32>
    %80 = arith.addf %79, %10 : vector<8x16xf32>
    %81 = tpu.iota {dimensions = array<i32: 0>} : vector<16x32xi32>
    %82 = tpu.iota {dimensions = array<i32: 1>} : vector<16x32xi32>
    %c2_i32 = arith.constant 2 : i32
    %83 = vector.broadcast %c2_i32 : i32 to vector<16x32xi32>
    %84 = arith.muli %83, %81 : vector<16x32xi32>
    %c0_i32_33 = arith.constant 0 : i32
    %85 = vector.broadcast %c0_i32_33 : i32 to vector<16x32xi32>
    %86 = arith.addi %84, %85 : vector<16x32xi32>
    %87 = arith.cmpi eq, %82, %86 : vector<16x32xi32>
    %88 = arith.extui %87 : vector<16x32xi1> to vector<16x32xi32>
    %89 = arith.sitofp %88 : vector<16x32xi32> to vector<16x32xf32>
    %cst_34 = arith.constant dense<0.000000e+00> : vector<8x32xf32>
    %90 = tpu.matmul %80, %89, %cst_34 {dimension_numbers = #tpu.dot_dimension_numbers<[1], [0], [0], [1], [0, 0, 1, 1], [], []>} : vector<8x16xf32>, vector<16x32xf32>, vector<8x32xf32> -> vector<8x32xf32>
    %91 = vector.extract_strided_slice %78 {offsets = [8, 0], sizes = [8, 16], strides = [1, 1]} : vector<16x16xf32> to vector<8x16xf32>
    %92 = arith.addf %91, %10 : vector<8x16xf32>
    %93 = tpu.iota {dimensions = array<i32: 0>} : vector<16x32xi32>
    %94 = tpu.iota {dimensions = array<i32: 1>} : vector<16x32xi32>
    %c2_i32_35 = arith.constant 2 : i32
    %95 = vector.broadcast %c2_i32_35 : i32 to vector<16x32xi32>
    %96 = arith.muli %95, %93 : vector<16x32xi32>
    %c1_i32_36 = arith.constant 1 : i32
    %97 = vector.broadcast %c1_i32_36 : i32 to vector<16x32xi32>
    %98 = arith.addi %96, %97 : vector<16x32xi32>
    %99 = arith.cmpi eq, %94, %98 : vector<16x32xi32>
    %100 = arith.extui %99 : vector<16x32xi1> to vector<16x32xi32>
    %101 = arith.sitofp %100 : vector<16x32xi32> to vector<16x32xf32>
    %cst_37 = arith.constant dense<0.000000e+00> : vector<8x32xf32>
    %102 = tpu.matmul %92, %101, %cst_37 {dimension_numbers = #tpu.dot_dimension_numbers<[1], [0], [0], [1], [0, 0, 1, 1], [], []>} : vector<8x16xf32>, vector<16x32xf32>, vector<8x32xf32> -> vector<8x32xf32>
    %103 = arith.addf %90, %102 : vector<8x32xf32>
    %cst_38 = arith.constant 0.000000e+00 : f32
    %104 = vector.broadcast %cst_38 : f32 to vector<8x32xf32>
    %c80 = arith.constant 80 : index
    %c0_39 = arith.constant 0 : index
    %105 = vector.load %arg2[%c80, %c0_39] : memref<168x8xf32, #tpu.memory_space<vmem>>, vector<8x8xf32>
    %cst_40 = arith.constant dense<0.000000e+00> : vector<8x32xf32>
    %106 = tpu.matmul %105, %103, %cst_40 {dimension_numbers = #tpu.dot_dimension_numbers<[1], [0], [0], [1], [0, 0, 1, 1], [], []>} : vector<8x8xf32>, vector<8x32xf32>, vector<8x32xf32> -> vector<8x32xf32>
    %107 = tpu.iota {dimensions = array<i32: 0>} : vector<32x32xi32>
    %108 = tpu.iota {dimensions = array<i32: 1>} : vector<32x32xi32>
    %c-1_i32_41 = arith.constant -1 : i32
    %109 = vector.broadcast %c-1_i32_41 : i32 to vector<32x32xi32>
    %110 = arith.addi %108, %109 : vector<32x32xi32>
    %c0_i32_42 = arith.constant 0 : i32
    %111 = vector.broadcast %c0_i32_42 : i32 to vector<32x32xi32>
    %112 = arith.cmpi slt, %110, %111 : vector<32x32xi32>
    %c0_i32_43 = arith.constant 0 : i32
    %113 = vector.broadcast %c0_i32_43 : i32 to vector<32x32xi32>
    %114 = arith.subi %113, %110 : vector<32x32xi32>
    %115 = arith.select %112, %114, %110 : vector<32x32xi1>, vector<32x32xi32>
    %c32_i32 = arith.constant 32 : i32
    %116 = vector.broadcast %c32_i32 : i32 to vector<32x32xi32>
    %117 = arith.cmpi sge, %115, %116 : vector<32x32xi32>
    %c62_i32 = arith.constant 62 : i32
    %118 = vector.broadcast %c62_i32 : i32 to vector<32x32xi32>
    %119 = arith.subi %118, %115 : vector<32x32xi32>
    %120 = arith.select %117, %119, %115 : vector<32x32xi1>, vector<32x32xi32>
    %121 = arith.cmpi eq, %107, %120 : vector<32x32xi32>
    %122 = arith.extui %121 : vector<32x32xi1> to vector<32x32xi32>
    %123 = arith.sitofp %122 : vector<32x32xi32> to vector<32x32xf32>
    %cst_44 = arith.constant dense<0.000000e+00> : vector<8x32xf32>
    %124 = tpu.matmul %106, %123, %cst_44 {dimension_numbers = #tpu.dot_dimension_numbers<[1], [0], [0], [1], [0, 0, 1, 1], [], []>} : vector<8x32xf32>, vector<32x32xf32>, vector<8x32xf32> -> vector<8x32xf32>
    %125 = arith.addf %104, %124 : vector<8x32xf32>
    %c88 = arith.constant 88 : index
    %c0_45 = arith.constant 0 : index
    %126 = vector.load %arg2[%c88, %c0_45] : memref<168x8xf32, #tpu.memory_space<vmem>>, vector<8x8xf32>
    %cst_46 = arith.constant dense<0.000000e+00> : vector<8x32xf32>
    %127 = tpu.matmul %126, %103, %cst_46 {dimension_numbers = #tpu.dot_dimension_numbers<[1], [0], [0], [1], [0, 0, 1, 1], [], []>} : vector<8x8xf32>, vector<8x32xf32>, vector<8x32xf32> -> vector<8x32xf32>
    %128 = arith.addf %125, %127 : vector<8x32xf32>
    %c96 = arith.constant 96 : index
    %c0_47 = arith.constant 0 : index
    %129 = vector.load %arg2[%c96, %c0_47] : memref<168x8xf32, #tpu.memory_space<vmem>>, vector<8x8xf32>
    %cst_48 = arith.constant dense<0.000000e+00> : vector<8x32xf32>
    %130 = tpu.matmul %129, %103, %cst_48 {dimension_numbers = #tpu.dot_dimension_numbers<[1], [0], [0], [1], [0, 0, 1, 1], [], []>} : vector<8x8xf32>, vector<8x32xf32>, vector<8x32xf32> -> vector<8x32xf32>
    %131 = tpu.iota {dimensions = array<i32: 0>} : vector<32x32xi32>
    %132 = tpu.iota {dimensions = array<i32: 1>} : vector<32x32xi32>
    %c1_i32_49 = arith.constant 1 : i32
    %133 = vector.broadcast %c1_i32_49 : i32 to vector<32x32xi32>
    %134 = arith.addi %132, %133 : vector<32x32xi32>
    %c0_i32_50 = arith.constant 0 : i32
    %135 = vector.broadcast %c0_i32_50 : i32 to vector<32x32xi32>
    %136 = arith.cmpi slt, %134, %135 : vector<32x32xi32>
    %c0_i32_51 = arith.constant 0 : i32
    %137 = vector.broadcast %c0_i32_51 : i32 to vector<32x32xi32>
    %138 = arith.subi %137, %134 : vector<32x32xi32>
    %139 = arith.select %136, %138, %134 : vector<32x32xi1>, vector<32x32xi32>
    %c32_i32_52 = arith.constant 32 : i32
    %140 = vector.broadcast %c32_i32_52 : i32 to vector<32x32xi32>
    %141 = arith.cmpi sge, %139, %140 : vector<32x32xi32>
    %c62_i32_53 = arith.constant 62 : i32
    %142 = vector.broadcast %c62_i32_53 : i32 to vector<32x32xi32>
    %143 = arith.subi %142, %139 : vector<32x32xi32>
    %144 = arith.select %141, %143, %139 : vector<32x32xi1>, vector<32x32xi32>
    %145 = arith.cmpi eq, %131, %144 : vector<32x32xi32>
    %146 = arith.extui %145 : vector<32x32xi1> to vector<32x32xi32>
    %147 = arith.sitofp %146 : vector<32x32xi32> to vector<32x32xf32>
    %cst_54 = arith.constant dense<0.000000e+00> : vector<8x32xf32>
    %148 = tpu.matmul %130, %147, %cst_54 {dimension_numbers = #tpu.dot_dimension_numbers<[1], [0], [0], [1], [0, 0, 1, 1], [], []>} : vector<8x32xf32>, vector<32x32xf32>, vector<8x32xf32> -> vector<8x32xf32>
    %149 = arith.addf %128, %148 : vector<8x32xf32>
    %150 = vector.extract_strided_slice %1 {offsets = [0, 3], sizes = [8, 1], strides = [1, 1]} : vector<16x10xf32> to vector<8x1xf32>
    %151 = vector.broadcast %150 : vector<8x1xf32> to vector<8x32xf32>
    %152 = arith.addf %149, %151 : vector<8x32xf32>
    %cst_55 = arith.constant 0.000000e+00 : f32
    %153 = vector.broadcast %cst_55 : f32 to vector<8x32xf32>
    %154 = arith.maximumf %152, %153 : vector<8x32xf32>
    %cst_56 = arith.constant 0.000000e+00 : f32
    %155 = vector.broadcast %cst_56 : f32 to vector<8x32xf32>
    %c104 = arith.constant 104 : index
    %c0_57 = arith.constant 0 : index
    %156 = vector.load %arg2[%c104, %c0_57] : memref<168x8xf32, #tpu.memory_space<vmem>>, vector<8x8xf32>
    %cst_58 = arith.constant dense<0.000000e+00> : vector<8x32xf32>
    %157 = tpu.matmul %156, %154, %cst_58 {dimension_numbers = #tpu.dot_dimension_numbers<[1], [0], [0], [1], [0, 0, 1, 1], [], []>} : vector<8x8xf32>, vector<8x32xf32>, vector<8x32xf32> -> vector<8x32xf32>
    %cst_59 = arith.constant dense<0.000000e+00> : vector<8x32xf32>
    %158 = tpu.matmul %157, %123, %cst_59 {dimension_numbers = #tpu.dot_dimension_numbers<[1], [0], [0], [1], [0, 0, 1, 1], [], []>} : vector<8x32xf32>, vector<32x32xf32>, vector<8x32xf32> -> vector<8x32xf32>
    %159 = arith.addf %155, %158 : vector<8x32xf32>
    %c112 = arith.constant 112 : index
    %c0_60 = arith.constant 0 : index
    %160 = vector.load %arg2[%c112, %c0_60] : memref<168x8xf32, #tpu.memory_space<vmem>>, vector<8x8xf32>
    %cst_61 = arith.constant dense<0.000000e+00> : vector<8x32xf32>
    %161 = tpu.matmul %160, %154, %cst_61 {dimension_numbers = #tpu.dot_dimension_numbers<[1], [0], [0], [1], [0, 0, 1, 1], [], []>} : vector<8x8xf32>, vector<8x32xf32>, vector<8x32xf32> -> vector<8x32xf32>
    %162 = arith.addf %159, %161 : vector<8x32xf32>
    %c120 = arith.constant 120 : index
    %c0_62 = arith.constant 0 : index
    %163 = vector.load %arg2[%c120, %c0_62] : memref<168x8xf32, #tpu.memory_space<vmem>>, vector<8x8xf32>
    %cst_63 = arith.constant dense<0.000000e+00> : vector<8x32xf32>
    %164 = tpu.matmul %163, %154, %cst_63 {dimension_numbers = #tpu.dot_dimension_numbers<[1], [0], [0], [1], [0, 0, 1, 1], [], []>} : vector<8x8xf32>, vector<8x32xf32>, vector<8x32xf32> -> vector<8x32xf32>
    %cst_64 = arith.constant dense<0.000000e+00> : vector<8x32xf32>
    %165 = tpu.matmul %164, %147, %cst_64 {dimension_numbers = #tpu.dot_dimension_numbers<[1], [0], [0], [1], [0, 0, 1, 1], [], []>} : vector<8x32xf32>, vector<32x32xf32>, vector<8x32xf32> -> vector<8x32xf32>
    %166 = arith.addf %162, %165 : vector<8x32xf32>
    %167 = vector.extract_strided_slice %1 {offsets = [0, 4], sizes = [8, 1], strides = [1, 1]} : vector<16x10xf32> to vector<8x1xf32>
    %168 = vector.broadcast %167 : vector<8x1xf32> to vector<8x32xf32>
    %169 = arith.addf %166, %168 : vector<8x32xf32>
    %cst_65 = arith.constant 0.000000e+00 : f32
    %170 = vector.broadcast %cst_65 : f32 to vector<8x32xf32>
    %171 = arith.maximumf %169, %170 : vector<8x32xf32>
    %172 = arith.addf %171, %103 : vector<8x32xf32>
    %cst_66 = arith.constant 0.000000e+00 : f32
    %173 = vector.broadcast %cst_66 : f32 to vector<8x32xf32>
    %c128 = arith.constant 128 : index
    %c0_67 = arith.constant 0 : index
    %174 = vector.load %arg2[%c128, %c0_67] : memref<168x8xf32, #tpu.memory_space<vmem>>, vector<8x8xf32>
    %cst_68 = arith.constant dense<0.000000e+00> : vector<8x32xf32>
    %175 = tpu.matmul %174, %172, %cst_68 {dimension_numbers = #tpu.dot_dimension_numbers<[1], [0], [0], [1], [0, 0, 1, 1], [], []>} : vector<8x8xf32>, vector<8x32xf32>, vector<8x32xf32> -> vector<8x32xf32>
    %176 = arith.addf %173, %175 : vector<8x32xf32>
    %177 = vector.extract_strided_slice %1 {offsets = [0, 5], sizes = [8, 1], strides = [1, 1]} : vector<16x10xf32> to vector<8x1xf32>
    %178 = vector.broadcast %177 : vector<8x1xf32> to vector<8x32xf32>
    %179 = arith.addf %176, %178 : vector<8x32xf32>
    %cst_69 = arith.constant 0.000000e+00 : f32
    %180 = vector.broadcast %cst_69 : f32 to vector<8x32xf32>
    %181 = arith.maximumf %179, %180 : vector<8x32xf32>
    %cst_70 = arith.constant 0.000000e+00 : f32
    %182 = vector.broadcast %cst_70 : f32 to vector<8x32xf32>
    %c136 = arith.constant 136 : index
    %c0_71 = arith.constant 0 : index
    %183 = vector.load %arg2[%c136, %c0_71] : memref<168x8xf32, #tpu.memory_space<vmem>>, vector<8x8xf32>
    %cst_72 = arith.constant dense<0.000000e+00> : vector<8x32xf32>
    %184 = tpu.matmul %183, %181, %cst_72 {dimension_numbers = #tpu.dot_dimension_numbers<[1], [0], [0], [1], [0, 0, 1, 1], [], []>} : vector<8x8xf32>, vector<8x32xf32>, vector<8x32xf32> -> vector<8x32xf32>
    %185 = arith.addf %182, %184 : vector<8x32xf32>
    %186 = vector.extract_strided_slice %1 {offsets = [0, 6], sizes = [8, 1], strides = [1, 1]} : vector<16x10xf32> to vector<8x1xf32>
    %187 = vector.broadcast %186 : vector<8x1xf32> to vector<8x32xf32>
    %188 = arith.addf %185, %187 : vector<8x32xf32>
    %cst_73 = arith.constant 0.000000e+00 : f32
    %189 = vector.broadcast %cst_73 : f32 to vector<8x32xf32>
    %190 = arith.maximumf %188, %189 : vector<8x32xf32>
    %191 = arith.addf %172, %190 : vector<8x32xf32>
    %cst_74 = arith.constant 0.000000e+00 : f32
    %192 = vector.broadcast %cst_74 : f32 to vector<8x32xf32>
    %c144 = arith.constant 144 : index
    %c0_75 = arith.constant 0 : index
    %193 = vector.load %arg2[%c144, %c0_75] : memref<168x8xf32, #tpu.memory_space<vmem>>, vector<8x8xf32>
    %cst_76 = arith.constant dense<0.000000e+00> : vector<8x32xf32>
    %194 = tpu.matmul %193, %191, %cst_76 {dimension_numbers = #tpu.dot_dimension_numbers<[1], [0], [0], [1], [0, 0, 1, 1], [], []>} : vector<8x8xf32>, vector<8x32xf32>, vector<8x32xf32> -> vector<8x32xf32>
    %195 = arith.addf %192, %194 : vector<8x32xf32>
    %196 = vector.extract_strided_slice %1 {offsets = [0, 7], sizes = [8, 1], strides = [1, 1]} : vector<16x10xf32> to vector<8x1xf32>
    %197 = vector.broadcast %196 : vector<8x1xf32> to vector<8x32xf32>
    %198 = arith.addf %195, %197 : vector<8x32xf32>
    %cst_77 = arith.constant 0.000000e+00 : f32
    %199 = vector.broadcast %cst_77 : f32 to vector<8x32xf32>
    %200 = arith.maximumf %198, %199 : vector<8x32xf32>
    %cst_78 = arith.constant 0.000000e+00 : f32
    %201 = vector.broadcast %cst_78 : f32 to vector<8x32xf32>
    %c152 = arith.constant 152 : index
    %c0_79 = arith.constant 0 : index
    %202 = vector.load %arg2[%c152, %c0_79] : memref<168x8xf32, #tpu.memory_space<vmem>>, vector<8x8xf32>
    %cst_80 = arith.constant dense<0.000000e+00> : vector<8x32xf32>
    %203 = tpu.matmul %202, %200, %cst_80 {dimension_numbers = #tpu.dot_dimension_numbers<[1], [0], [0], [1], [0, 0, 1, 1], [], []>} : vector<8x8xf32>, vector<8x32xf32>, vector<8x32xf32> -> vector<8x32xf32>
    %204 = arith.addf %201, %203 : vector<8x32xf32>
    %205 = vector.extract_strided_slice %1 {offsets = [0, 8], sizes = [8, 1], strides = [1, 1]} : vector<16x10xf32> to vector<8x1xf32>
    %206 = vector.broadcast %205 : vector<8x1xf32> to vector<8x32xf32>
    %207 = arith.addf %204, %206 : vector<8x32xf32>
    %cst_81 = arith.constant 0.000000e+00 : f32
    %208 = vector.broadcast %cst_81 : f32 to vector<8x32xf32>
    %209 = arith.maximumf %207, %208 : vector<8x32xf32>
    %210 = arith.addf %191, %209 : vector<8x32xf32>
    %cst_82 = arith.constant 0.000000e+00 : f32
    %211 = vector.broadcast %cst_82 : f32 to vector<4x32xf32>
    %c160 = arith.constant 160 : index
    %c0_83 = arith.constant 0 : index
    %212 = vector.load %arg2[%c160, %c0_83] : memref<168x8xf32, #tpu.memory_space<vmem>>, vector<4x8xf32>
    %cst_84 = arith.constant dense<0.000000e+00> : vector<4x32xf32>
    %213 = tpu.matmul %212, %210, %cst_84 {dimension_numbers = #tpu.dot_dimension_numbers<[1], [0], [0], [1], [0, 0, 1, 1], [], []>} : vector<4x8xf32>, vector<8x32xf32>, vector<4x32xf32> -> vector<4x32xf32>
    %214 = arith.addf %211, %213 : vector<4x32xf32>
    %215 = vector.extract_strided_slice %1 {offsets = [0, 9], sizes = [4, 1], strides = [1, 1]} : vector<16x10xf32> to vector<4x1xf32>
    %216 = vector.broadcast %215 : vector<4x1xf32> to vector<4x32xf32>
    %217 = arith.addf %214, %216 : vector<4x32xf32>
    %c0_85 = arith.constant 0 : index
    %c0_86 = arith.constant 0 : index
    %c0_87 = arith.constant 0 : index
    %218 = vector.load %arg4[%c0_85, %c0_86, %c0_87] : memref<1x4x32xf32, #tpu.memory_space<vmem>>, vector<1x4x32xf32>
    %219 = vector.shape_cast %218 : vector<1x4x32xf32> to vector<4x32xf32>
    %220 = vector.shape_cast %217 : vector<4x32xf32> to vector<1x4x32xf32>
    tpu.vector_store %arg4[%c0_85, %c0_86, %c0_87], %220 {strides = array<i32>} : memref<1x4x32xf32, #tpu.memory_space<vmem>>, vector<1x4x32xf32>,
    return
  }
  func.func @transform_0(%arg0: i32) -> (i32, i32, i32) {
    %c0_i32 = arith.constant 0 : i32
    %c0_i32_0 = arith.constant 0 : i32
    %c0_i32_1 = arith.constant 0 : i32
    return %arg0, %c0_i32, %c0_i32_0 : i32, i32, i32
  }
  func.func @transform_1(%arg0: i32) -> (i32, i32) {
    %c0_i32 = arith.constant 0 : i32
    %c0_i32_0 = arith.constant 0 : i32
    %c0_i32_1 = arith.constant 0 : i32
    return %c0_i32, %c0_i32_0 : i32, i32
  }
  func.func @transform_2(%arg0: i32) -> (i32, i32, i32) {
    %c0_i32 = arith.constant 0 : i32
    %c0_i32_0 = arith.constant 0 : i32
    %c0_i32_1 = arith.constant 0 : i32
    return %arg0, %c0_i32, %c0_i32_0 : i32, i32, i32
  }
  func.func @transform_3(%arg0: i32) -> (i32, i32, i32) {
    %c0_i32 = arith.constant 0 : i32
    %c0_i32_0 = arith.constant 0 : i32
    %c0_i32_1 = arith.constant 0 : i32
    return %arg0, %c0_i32, %c0_i32_0 : i32, i32, i32
  }
}

</mosaic_0001>

<llo_original>
// kernel: _lambda_.1
$region0: #{_lambda_.1}
  #allocation0 [shape = 'u32[]', space=smem, size = 0x4, offset = 0x4, fixed_abs, tag = 'smem constant byte address 0x4 - core index']
  #allocation1 [shape = 'u32[144,128]{1,0:T(1,128)}', space=vmem, size = 0x12000, scoped, tag = 'internal scratch']
  %s0 = inlined_call_operand.vmem [shape: f32[2,4,16], index: 0, kind: input, shape index: {}]
  %s1 = inlined_call_operand.vmem [shape: f32[168,8], index: 1, kind: input, shape index: {}]
  %s2 = inlined_call_operand.vmem [shape: f32[2,16,10], index: 2, kind: input, shape index: {}]
  %s3 = inlined_call_operand.hbm [shape: f32[2,4,32], index: 3, kind: output, shape index: {}]
  %s4 = sld [smem:[#allocation0]]
  $region45: #{_lambda_.1} parent=0
    _
  %s6 = ssub.s32 1, %s4
  %s7 = scalar_select 0, %s6, %s4
  $region1: #{_lambda_.1} parent=0
    #allocation2 [shape = 'u8[4096]{0}', space=vmem, size = 0x1000, scoped, tag = 'output window, operand 0']
    #allocation3 [shape = 's32[2]{0}', space=sflag, size = 0x8, scoped, tag = 'scoped memory for _lambda_.1']
    %8 = vsyncpa [#allocation3], 0
    %s9 = scalar_lea.sflag [#allocation3], 1
    %10 = vsyncpa %s9, 0
    loop: start=0, step=1, limit=4
    $region2: #{_lambda_.1} parent=1 // loop_pre_header
      _
    $region3: #{_lambda_.1} parent=1 // loop_header
      %s12 = sphi 0, %s16
      %p13 = scmp.ge.s32.totalorder %s12, 4
      %s22 = sphi 0, %s24
      %s25 = sphi 0, %s22
      %s26 = sphi 0, %s25
      %s42 = sphi 0, %s26
      %s46 = sphi 0, %s46
      %s48 = sphi 0, %s46
      %s49 = sphi 0, %s48
      %s63 = sphi 0, %s49
      %s69 = sphi 0, %s71
      %s72 = sphi 0, %s69
      %s73 = sphi 0, %s72
      %s89 = sphi 0, %s73
      %s95 = sphi 0, %s97
      %s98 = sphi 0, %s95
      %s99 = sphi 0, %s98
      %s115 = sphi 0, %s99
    $region4: #{_lambda_.1} parent=1 // loop_header_branch
      %15 = sbr.rel (%p13) target = $region8
    $region5: #{_lambda_.1} parent=1 // loop_body
      %s17 = ssub.s32 %s12, 1
      %s18 = ssub.s32 %s12, 2
      %s19 = sadd.s32 %s12, 1
      %s20 = ssub.s32 %s12, %s19
      %p21 = scmp.eq.s32.totalorder %s20, 0
      %s23 = sadd.s32 %s22, 1
      %s24 = scalar_select %p21, %s22, %s23
      %p27 = pneg %p21
      %p28 = scmp.eq.s32.totalorder %s12, 1
      %p29 = por %p27, %p28
      %p30 = scmp.ne.s32.totalorder %s22, %s25
      %p31 = scmp.eq.s32.totalorder %s12, 0
      %p32 = por %p30, %p31
      %p33 = scmp.ne.s32.totalorder %s22, %s25
      %p34 = scmp.eq.s32.totalorder %s17, 1
      %p35 = por %p33, %p34
      %p36 = scmp.ne.s32.totalorder %s25, %s26
      %p37 = scmp.eq.s32.totalorder %s17, 0
      %p38 = por %p36, %p37
      %p39 = scmp.ne.s32.totalorder %s25, %s26
      %p40 = scmp.eq.s32.totalorder %s18, 1
      %p41 = por %p39, %p40
      %p43 = scmp.ne.s32.totalorder %s26, %s42
      %p44 = scmp.eq.s32.totalorder %s18, 0
      %p45 = por %p43, %p44
      %s47 = sadd.s32 %s46, 1
      %p50 = scmp.eq.s32.totalorder %s12, 1
      %p51 = scmp.ne.s32.totalorder %s46, %s48
      %p52 = scmp.eq.s32.totalorder %s12, 0
      %p53 = por %p51, %p52
      %p54 = scmp.ne.s32.totalorder %s46, %s48
      %p55 = scmp.eq.s32.totalorder %s17, 1
      %p56 = por %p54, %p55
      %p57 = scmp.ne.s32.totalorder %s48, %s49
      %p58 = scmp.eq.s32.totalorder %s17, 0
      %p59 = por %p57, %p58
      %p60 = scmp.ne.s32.totalorder %s48, %s49
      %p61 = scmp.eq.s32.totalorder %s18, 1
      %p62 = por %p60, %p61
      %p64 = scmp.ne.s32.totalorder %s49, %s63
      %p65 = scmp.eq.s32.totalorder %s18, 0
      %p66 = por %p64, %p65
      %s67 = ssub.s32 %s12, %s19
      %p68 = scmp.eq.s32.totalorder %s67, 0
      %s70 = sadd.s32 %s69, 1
      %s71 = scalar_select %p68, %s69, %s70
      %p74 = pneg %p68
      %p75 = scmp.eq.s32.totalorder %s12, 1
      %p76 = por %p74, %p75
      %p77 = scmp.ne.s32.totalorder %s69, %s72
      %p78 = scmp.eq.s32.totalorder %s12, 0
      %p79 = por %p77, %p78
      %p80 = scmp.ne.s32.totalorder %s69, %s72
      %p81 = scmp.eq.s32.totalorder %s17, 1
      %p82 = por %p80, %p81
      %p83 = scmp.ne.s32.totalorder %s72, %s73
      %p84 = scmp.eq.s32.totalorder %s17, 0
      %p85 = por %p83, %p84
      %p86 = scmp.ne.s32.totalorder %s72, %s73
      %p87 = scmp.eq.s32.totalorder %s18, 1
      %p88 = por %p86, %p87
      %p90 = scmp.ne.s32.totalorder %s73, %s89
      %p91 = scmp.eq.s32.totalorder %s18, 0
      %p92 = por %p90, %p91
      %s93 = ssub.s32 %s12, %s19
      %p94 = scmp.eq.s32.totalorder %s93, 0
      %s96 = sadd.s32 %s95, 1
      %s97 = scalar_select %p94, %s95, %s96
      %p100 = pneg %p94
      %p101 = scmp.eq.s32.totalorder %s12, 1
      %p102 = por %p100, %p101
      %p103 = scmp.ne.s32.totalorder %s95, %s98
      %p104 = scmp.eq.s32.totalorder %s12, 0
      %p105 = por %p103, %p104
      %p106 = scmp.ne.s32.totalorder %s95, %s98
      %p107 = scmp.eq.s32.totalorder %s17, 1
      %p108 = por %p106, %p107
      %p109 = scmp.ne.s32.totalorder %s98, %s99
      %p110 = scmp.eq.s32.totalorder %s17, 0
      %p111 = por %p109, %p110
      %p112 = scmp.ne.s32.totalorder %s98, %s99
      %p113 = scmp.eq.s32.totalorder %s18, 1
      %p114 = por %p112, %p113
      %p116 = scmp.ne.s32.totalorder %s99, %s115
      %p117 = scmp.eq.s32.totalorder %s18, 0
      %p118 = por %p116, %p117
      %p119 = scmp.le.s32.totalorder 1, %s12
      %p120 = scmp.lt.s32.totalorder %s12, 3
      %p121 = pnand %p119, %p120
      %p122 = pneg %p121
      // Predicated region
      $region9: #{_lambda_.1} parent=5 // pred_check
        _
      $region10: #{_lambda_.1} parent=5 // pred_check_branch
        %124 = sbr.rel (%p121) target = $region12
      $region11: #{_lambda_.1} parent=5 // pred_region
        %s125 = ssub.s32 %s12, 1
        // Predicated region
        $region13: #{_lambda_.1} parent=11 // pred_check
          %p126 = pneg %p59
        $region14: #{_lambda_.1} parent=11 // pred_check_branch
          %128 = sbr.rel (%p126) target = $region16
        $region15: #{_lambda_.1} parent=11 // pred_region
          _
        $region16: #{_lambda_.1} parent=11 // pred_fallthru
          _
      $region12: #{_lambda_.1} parent=5 // pred_fallthru
        _
      %p129 = scmp.lt.s32.totalorder %s12, 2
      // Predicated region
      $region17: #{_lambda_.1} parent=5 // pred_check
        %p130 = pneg %p129
      $region18: #{_lambda_.1} parent=5 // pred_check_branch
        %132 = sbr.rel (%p130) target = $region20
      $region19: #{_lambda_.1} parent=5 // pred_region
        // Predicated region
        $region21: #{_lambda_.1} parent=19 // pred_check
          %p133 = pneg %p32
        $region22: #{_lambda_.1} parent=19 // pred_check_branch
          %135 = sbr.rel (%p133) target = $region24
        $region23: #{_lambda_.1} parent=19 // pred_region
          %p136 = scmp.lt.s32.totalorder %s12, 1
          %s137 = scalar_select %p136, %s12, 1
          %s138 = smul.addr %s137, 4
          %s139 = scalar_lea.vmem %s0, %s138
        $region24: #{_lambda_.1} parent=19 // pred_fallthru
          _
        // Predicated region
        $region25: #{_lambda_.1} parent=19 // pred_check
          %p140 = pneg %p79
        $region26: #{_lambda_.1} parent=19 // pred_check_branch
          %142 = sbr.rel (%p140) target = $region28
        $region27: #{_lambda_.1} parent=19 // pred_region
          %p143 = scmp.lt.s32.totalorder %s12, 1
          %s144 = scalar_select %p143, %s12, 1
          %s145 = smul.addr %s144, 2
          %s146 = smul.addr %s145, 8
          %s147 = scalar_lea.vmem %s2, %s146
        $region28: #{_lambda_.1} parent=19 // pred_fallthru
          _
      $region20: #{_lambda_.1} parent=5 // pred_fallthru
        _
      %p148 = scmp.le.s32.totalorder 1, %s12
      %p149 = scmp.lt.s32.totalorder %s12, 3
      %p150 = pnand %p148, %p149
      %p151 = pneg %p150
      // Predicated region
      $region29: #{_lambda_.1} parent=5 // pred_check
        _
      $region30: #{_lambda_.1} parent=5 // pred_check_branch
        %153 = sbr.rel (%p150) target = $region32
      $region31: #{_lambda_.1} parent=5 // pred_region
        %s154 = ssub.s32 %s12, 1
        %p155 = scmp.lt.s32.totalorder %s17, 1
        %s156 = scalar_select %p155, %s17, 1
        %s157 = smul.addr %s156, 4
        %s158 = scalar_lea.vmem %s0, %s157
        %p159 = pneg %p38
        %p160 = pneg %p35
        %p161 = pneg %p59
        %p162 = pneg %p56
        %p163 = scmp.lt.s32.totalorder %s17, 1
        %s164 = scalar_select %p163, %s17, 1
        %s165 = smul.addr %s164, 2
        %s166 = smul.addr %s165, 8
        %s167 = scalar_lea.vmem %s2, %s166
        %p168 = pneg %p85
        %p169 = pneg %p82
        %p170 = pneg %p111
        %p171 = pneg %p108
        %s172 = sand.u32 %s98, 1
        %s173 = scalar_lea.sflag [#allocation3], %s172
        %s174 = sand.u32 %s98, 1
        %s175 = smul.addr %s174, 4
        %s176 = scalar_lea.vmem [#allocation2], %s175
        %p177 = scmp.lt.s32.totalorder %s17, 1
        %s178 = scalar_select %p177, %s17, 1
        %s179 = smul.addr %s178, 4
        %s180 = scalar_lea.vmem %s0, %s179
        %p181 = scmp.lt.s32.totalorder %s17, 1
        %s182 = scalar_select %p181, %s17, 1
        %s183 = smul.addr %s182, 2
        %s184 = smul.addr %s183, 8
        %s185 = scalar_lea.vmem %s2, %s184
        %v186 = vld [vmem:[%s185] sm:$0xff]
        %v187 = vld [vmem:[%s185 + $0x8] sm:$0xff]
        %v188 = vld [vmem:[%s180] sm:$0xf]
        %v189 = vld [vmem:[%s1] sm:$0xff]
        %191 = vset.pattern.permute.xlu0 0
        %192 = vperm.xlu0 %191, %v186
        %v193 = vpop.permute.xlu0 %192
        %vm195 = vcmask 31744
        %v197 = vsel %vm195, %v189, 0
        %vm199 = vcmask 1043456
        %v201 = vsel %vm199, %v188, 0
        %203 = vmatprep.subr.mxu0 0.0
        %204 = vmatpush1.msra.mxu0 %v201
        %205 = vmatprep.subr.mxu0 0.0
        %206 = vmatpush1.msra.mxu0 0.0
        %207 = vmatprep.subr.mxu0 0.0
        %208 = vmatpush1.msra.mxu0 0.0
        %209 = vmatprep.subr.mxu0 0.0
        %210 = vmatpush1.msra.mxu0 0.0
        %211 = vmatprep.subr.mxu0 0.0
        %212 = vmatpush1.msra.mxu0 0.0
        %213 = vmatprep.subr.mxu0 0.0
        %214 = vmatpush1.msra.mxu0 0.0
        %215 = vmatprep.subr.mxu0 0.0
        %216 = vmatpush1.msra.mxu0 0.0
        %217 = vmatprep.subr.mxu0 0.0
        %218 = vmatpush1.msra.mxu0 0.0
        %219 = vmatprep.subr.mxu0 0.0
        %220 = vmatpush1.msra.mxu0 0.0
        %221 = vmatprep.subr.mxu0 0.0
        %222 = vmatpush1.msra.mxu0 0.0
        %223 = vmatprep.subr.mxu0 0.0
        %224 = vmatpush1.msra.mxu0 0.0
        %225 = vmatprep.subr.mxu0 0.0
        %226 = vmatpush1.msra.mxu0 0.0
        %227 = vmatprep.subr.mxu0 0.0
        %228 = vmatpush1.msra.mxu0 0.0
        %229 = vmatprep.subr.mxu0 0.0
        %230 = vmatpush1.msra.mxu0 0.0
        %231 = vmatprep.subr.mxu0 0.0
        %232 = vmatpush1.msra.mxu0 0.0
        %233 = vmatprep.subr.mxu0 0.0
        %234 = vmatpush1.msra.mxu0 0.0
        %235 = vmatprep.subr.mxu0 0.0
        %236 = vmatpush1.msra.mxu0 0.0
        %237 = vmatprep.subr.mxu0 0.0
        %238 = vmatpush1.msra.mxu0 0.0
        %239 = vmatprep.subr.mxu0 0.0
        %240 = vmatpush1.msra.mxu0 0.0
        %241 = vmatprep.subr.mxu0 0.0
        %242 = vmatpush1.msra.mxu0 0.0
        %243 = vmatprep.subr.mxu0 0.0
        %244 = vmatpush1.msra.mxu0 0.0
        %245 = vmatprep.subr.mxu0 0.0
        %246 = vmatpush1.msra.mxu0 0.0
        %247 = vmatprep.subr.mxu0 0.0
        %248 = vmatpush1.msra.mxu0 0.0
        %249 = vmatprep.subr.mxu0 0.0
        %250 = vmatpush1.msra.mxu0 0.0
        %251 = vmatprep.subr.mxu0 0.0
        %252 = vmatpush1.msra.mxu0 0.0
        %253 = vmatprep.subr.mxu0 0.0
        %254 = vmatpush1.msra.mxu0 0.0
        %255 = vmatprep.subr.mxu0 0.0
        %256 = vmatpush1.msra.mxu0 0.0
        %257 = vmatprep.subr.mxu0 0.0
        %258 = vmatpush1.msra.mxu0 0.0
        %259 = vmatprep.subr.mxu0 0.0
        %260 = vmatpush1.msra.mxu0 0.0
        %261 = vmatprep.subr.mxu0 0.0
        %262 = vmatpush1.msra.mxu0 0.0
        %263 = vmatprep.subr.mxu0 0.0
        %264 = vmatpush1.msra.mxu0 0.0
        %265 = vmatprep.subr.mxu0 0.0
        %266 = vmatpush1.msra.mxu0 0.0
        %267 = vmatprep.mubr.f32.mxu0 0.0
        %268 = vmatmul.mubr.f32.gmra.mrb[0].mxu0 %v197
        %v269 = vpop.f32.mrb[0].mxu0
        %v270 = vadd.f32 %v193, %v269
        %v271 = vpop.f32.mrb[0].mxu0
        %272 = vdwg.mxu0
        %v273 = vld [vmem:[%s1 + $0x8] sm:$0xff]
        %vm274 = vcmask 64512
        %v276 = vsel %vm274, %v273, 0
        %278 = vmatprep.subr.mxu0 0.0
        %279 = vmatpush1.msra.mxu0 %v270
        %280 = vmatprep.subr.mxu0 0.0
        %281 = vmatpush1.msra.mxu0 0.0
        %282 = vmatprep.subr.mxu0 0.0
        %283 = vmatpush1.msra.mxu0 0.0
        %284 = vmatprep.subr.mxu0 0.0
        %285 = vmatpush1.msra.mxu0 0.0
        %286 = vmatprep.subr.mxu0 0.0
        %287 = vmatpush1.msra.mxu0 0.0
        %288 = vmatprep.subr.mxu0 0.0
        %289 = vmatpush1.msra.mxu0 0.0
        %290 = vmatprep.subr.mxu0 0.0
        %291 = vmatpush1.msra.mxu0 0.0
        %292 = vmatprep.subr.mxu0 0.0
        %293 = vmatpush1.msra.mxu0 0.0
        %294 = vmatprep.subr.mxu0 0.0
        %295 = vmatpush1.msra.mxu0 0.0
        %296 = vmatprep.subr.mxu0 0.0
        %297 = vmatpush1.msra.mxu0 0.0
        %298 = vmatprep.subr.mxu0 0.0
        %299 = vmatpush1.msra.mxu0 0.0
        %300 = vmatprep.subr.mxu0 0.0
        %301 = vmatpush1.msra.mxu0 0.0
        %302 = vmatprep.subr.mxu0 0.0
        %303 = vmatpush1.msra.mxu0 0.0
        %304 = vmatprep.subr.mxu0 0.0
        %305 = vmatpush1.msra.mxu0 0.0
        %306 = vmatprep.subr.mxu0 0.0
        %307 = vmatpush1.msra.mxu0 0.0
        %308 = vmatprep.subr.mxu0 0.0
        %309 = vmatpush1.msra.mxu0 0.0
        %310 = vmatprep.subr.mxu0 0.0
        %311 = vmatpush1.msra.mxu0 0.0
        %312 = vmatprep.subr.mxu0 0.0
        %313 = vmatpush1.msra.mxu0 0.0
        %314 = vmatprep.subr.mxu0 0.0
        %315 = vmatpush1.msra.mxu0 0.0
        %316 = vmatprep.subr.mxu0 0.0
        %317 = vmatpush1.msra.mxu0 0.0
        %318 = vmatprep.subr.mxu0 0.0
        %319 = vmatpush1.msra.mxu0 0.0
        %320 = vmatprep.subr.mxu0 0.0
        %321 = vmatpush1.msra.mxu0 0.0
        %322 = vmatprep.subr.mxu0 0.0
        %323 = vmatpush1.msra.mxu0 0.0
        %324 = vmatprep.subr.mxu0 0.0
        %325 = vmatpush1.msra.mxu0 0.0
        %326 = vmatprep.subr.mxu0 0.0
        %327 = vmatpush1.msra.mxu0 0.0
        %328 = vmatprep.subr.mxu0 0.0
        %329 = vmatpush1.msra.mxu0 0.0
        %330 = vmatprep.subr.mxu0 0.0
        %331 = vmatpush1.msra.mxu0 0.0
        %332 = vmatprep.subr.mxu0 0.0
        %333 = vmatpush1.msra.mxu0 0.0
        %334 = vmatprep.subr.mxu0 0.0
        %335 = vmatpush1.msra.mxu0 0.0
        %336 = vmatprep.subr.mxu0 0.0
        %337 = vmatpush1.msra.mxu0 0.0
        %338 = vmatprep.subr.mxu0 0.0
        %339 = vmatpush1.msra.mxu0 0.0
        %340 = vmatprep.subr.mxu0 0.0
        %341 = vmatpush1.msra.mxu0 0.0
        %342 = vmatprep.mubr.f32.mxu0 0.0
        %343 = vmatmul.mubr.f32.gmra.mrb[0].mxu0 %v276
        %v344 = vpop.f32.mrb[0].mxu0
        %v345 = vadd.f32 0.0, %v344
        %v346 = vpop.f32.mrb[0].mxu0
        %347 = vdwg.mxu0
        %v348 = vlaneseq
        %v349 = vshrl.u32 %v348, 7
        %v350 = vadd.s32 %v349, 8
        %v351 = vlaneseq
        %v352 = vand.u32 %v351, 127
        %v353 = vadd.s32 %v352, 4294967295
        %vm354 = vcmp.lt.s32.totalorder %v353, 0
        %v355 = vsub.s32 0, %v353
        %v356 = vsel %vm354, %v355, %v353
        %vm357 = vcmp.ge.s32.totalorder %v356, 16
        %v358 = vsub.s32 30, %v356
        %v359 = vsel %vm357, %v358, %v356
        %vm360 = vcmp.eq.s32.totalorder %v349, %v359
        %vm361 = vcmp.eq.s32.totalorder %v350, %v359
        %v362 = vsel %vm360, 1, 0
        %v363 = vsel %vm361, 1, 0
        %v364 = vcvt.s32.f32 %v362
        %v365 = vcvt.s32.f32 %v363
        %v366 = vld [vmem:[%s1 + $0x10] sm:$0xff]
        %v368 = vsel %vm274, %v366, 0
        %370 = vmatprep.subr.mxu0 0.0
        %371 = vmatpush1.msra.mxu0 %v270
        %372 = vmatprep.subr.mxu0 0.0
        %373 = vmatpush1.msra.mxu0 0.0
        %374 = vmatprep.subr.mxu0 0.0
        %375 = vmatpush1.msra.mxu0 0.0
        %376 = vmatprep.subr.mxu0 0.0
        %377 = vmatpush1.msra.mxu0 0.0
        %378 = vmatprep.subr.mxu0 0.0
        %379 = vmatpush1.msra.mxu0 0.0
        %380 = vmatprep.subr.mxu0 0.0
        %381 = vmatpush1.msra.mxu0 0.0
        %382 = vmatprep.subr.mxu0 0.0
        %383 = vmatpush1.msra.mxu0 0.0
        %384 = vmatprep.subr.mxu0 0.0
        %385 = vmatpush1.msra.mxu0 0.0
        %386 = vmatprep.subr.mxu0 0.0
        %387 = vmatpush1.msra.mxu0 0.0
        %388 = vmatprep.subr.mxu0 0.0
        %389 = vmatpush1.msra.mxu0 0.0
        %390 = vmatprep.subr.mxu0 0.0
        %391 = vmatpush1.msra.mxu0 0.0
        %392 = vmatprep.subr.mxu0 0.0
        %393 = vmatpush1.msra.mxu0 0.0
        %394 = vmatprep.subr.mxu0 0.0
        %395 = vmatpush1.msra.mxu0 0.0
        %396 = vmatprep.subr.mxu0 0.0
        %397 = vmatpush1.msra.mxu0 0.0
        %398 = vmatprep.subr.mxu0 0.0
        %399 = vmatpush1.msra.mxu0 0.0
        %400 = vmatprep.subr.mxu0 0.0
        %401 = vmatpush1.msra.mxu0 0.0
        %402 = vmatprep.subr.mxu0 0.0
        %403 = vmatpush1.msra.mxu0 0.0
        %404 = vmatprep.subr.mxu0 0.0
        %405 = vmatpush1.msra.mxu0 0.0
        %406 = vmatprep.subr.mxu0 0.0
        %407 = vmatpush1.msra.mxu0 0.0
        %408 = vmatprep.subr.mxu0 0.0
        %409 = vmatpush1.msra.mxu0 0.0
        %410 = vmatprep.subr.mxu0 0.0
        %411 = vmatpush1.msra.mxu0 0.0
        %412 = vmatprep.subr.mxu0 0.0
        %413 = vmatpush1.msra.mxu0 0.0
        %414 = vmatprep.subr.mxu0 0.0
        %415 = vmatpush1.msra.mxu0 0.0
        %416 = vmatprep.subr.mxu0 0.0
        %417 = vmatpush1.msra.mxu0 0.0
        %418 = vmatprep.subr.mxu0 0.0
        %419 = vmatpush1.msra.mxu0 0.0
        %420 = vmatprep.subr.mxu0 0.0
        %421 = vmatpush1.msra.mxu0 0.0
        %422 = vmatprep.subr.mxu0 0.0
        %423 = vmatpush1.msra.mxu0 0.0
        %424 = vmatprep.subr.mxu0 0.0
        %425 = vmatpush1.msra.mxu0 0.0
        %426 = vmatprep.subr.mxu0 0.0
        %427 = vmatpush1.msra.mxu0 0.0
        %428 = vmatprep.subr.mxu0 0.0
        %429 = vmatpush1.msra.mxu0 0.0
        %430 = vmatprep.subr.mxu0 0.0
        %431 = vmatpush1.msra.mxu0 0.0
        %432 = vmatprep.subr.mxu0 0.0
        %433 = vmatpush1.msra.mxu0 0.0
        %434 = vmatprep.mubr.f32.mxu0 0.0
        %435 = vmatmul.mubr.f32.gmra.mrb[0].mxu0 %v368
        %v436 = vpop.f32.mrb[0].mxu0
        %v437 = vadd.f32 0.0, %v436
        %v438 = vpop.f32.mrb[0].mxu0
        %439 = vdwg.mxu0
        %vm440 = vcmask 130048
        %v442 = vsel %vm440, %v345, 0
        %444 = vmatprep.subr.mxu0 0.0
        %445 = vmatpush1.msra.mxu0 %v364
        %446 = vmatprep.subr.mxu0 0.0
        %447 = vmatpush1.msra.mxu0 %v365
        %448 = vmatprep.subr.mxu0 0.0
        %449 = vmatpush1.msra.mxu0 0.0
        %450 = vmatprep.subr.mxu0 0.0
        %451 = vmatpush1.msra.mxu0 0.0
        %452 = vmatprep.subr.mxu0 0.0
        %453 = vmatpush1.msra.mxu0 0.0
        %454 = vmatprep.subr.mxu0 0.0
        %455 = vmatpush1.msra.mxu0 0.0
        %456 = vmatprep.subr.mxu0 0.0
        %457 = vmatpush1.msra.mxu0 0.0
        %458 = vmatprep.subr.mxu0 0.0
        %459 = vmatpush1.msra.mxu0 0.0
        %460 = vmatprep.subr.mxu0 0.0
        %461 = vmatpush1.msra.mxu0 0.0
        %462 = vmatprep.subr.mxu0 0.0
        %463 = vmatpush1.msra.mxu0 0.0
        %464 = vmatprep.subr.mxu0 0.0
        %465 = vmatpush1.msra.mxu0 0.0
        %466 = vmatprep.subr.mxu0 0.0
        %467 = vmatpush1.msra.mxu0 0.0
        %468 = vmatprep.subr.mxu0 0.0
        %469 = vmatpush1.msra.mxu0 0.0
        %470 = vmatprep.subr.mxu0 0.0
        %471 = vmatpush1.msra.mxu0 0.0
        %472 = vmatprep.subr.mxu0 0.0
        %473 = vmatpush1.msra.mxu0 0.0
        %474 = vmatprep.subr.mxu0 0.0
        %475 = vmatpush1.msra.mxu0 0.0
        %476 = vmatprep.subr.mxu0 0.0
        %477 = vmatpush1.msra.mxu0 0.0
        %478 = vmatprep.subr.mxu0 0.0
        %479 = vmatpush1.msra.mxu0 0.0
        %480 = vmatprep.subr.mxu0 0.0
        %481 = vmatpush1.msra.mxu0 0.0
        %482 = vmatprep.subr.mxu0 0.0
        %483 = vmatpush1.msra.mxu0 0.0
        %484 = vmatprep.subr.mxu0 0.0
        %485 = vmatpush1.msra.mxu0 0.0
        %486 = vmatprep.subr.mxu0 0.0
        %487 = vmatpush1.msra.mxu0 0.0
        %488 = vmatprep.subr.mxu0 0.0
        %489 = vmatpush1.msra.mxu0 0.0
        %490 = vmatprep.subr.mxu0 0.0
        %491 = vmatpush1.msra.mxu0 0.0
        %492 = vmatprep.subr.mxu0 0.0
        %493 = vmatpush1.msra.mxu0 0.0
        %494 = vmatprep.subr.mxu0 0.0
        %495 = vmatpush1.msra.mxu0 0.0
        %496 = vmatprep.subr.mxu0 0.0
        %497 = vmatpush1.msra.mxu0 0.0
        %498 = vmatprep.subr.mxu0 0.0
        %499 = vmatpush1.msra.mxu0 0.0
        %500 = vmatprep.subr.mxu0 0.0
        %501 = vmatpush1.msra.mxu0 0.0
        %502 = vmatprep.subr.mxu0 0.0
        %503 = vmatpush1.msra.mxu0 0.0
        %504 = vmatprep.subr.mxu0 0.0
        %505 = vmatpush1.msra.mxu0 0.0
        %506 = vmatprep.subr.mxu0 0.0
        %507 = vmatpush1.msra.mxu0 0.0
        %508 = vmatprep.mubr.f32.mxu0 0.0
        %509 = vmatmul.mubr.f32.gmra.mrb[0].mxu0 %v442
        %v510 = vpop.f32.mrb[0].mxu0
        %v511 = vadd.f32 %v437, %v510
        %v512 = vpop.f32.mrb[0].mxu0
        %513 = vdwg.mxu0
        %v514 = vld [vmem:[%s1 + $0x18] sm:$0xff]
        %v516 = vsel %vm274, %v514, 0
        %518 = vmatprep.subr.mxu0 0.0
        %519 = vmatpush1.msra.mxu0 %v270
        %520 = vmatprep.subr.mxu0 0.0
        %521 = vmatpush1.msra.mxu0 0.0
        %522 = vmatprep.subr.mxu0 0.0
        %523 = vmatpush1.msra.mxu0 0.0
        %524 = vmatprep.subr.mxu0 0.0
        %525 = vmatpush1.msra.mxu0 0.0
        %526 = vmatprep.subr.mxu0 0.0
        %527 = vmatpush1.msra.mxu0 0.0
        %528 = vmatprep.subr.mxu0 0.0
        %529 = vmatpush1.msra.mxu0 0.0
        %530 = vmatprep.subr.mxu0 0.0
        %531 = vmatpush1.msra.mxu0 0.0
        %532 = vmatprep.subr.mxu0 0.0
        %533 = vmatpush1.msra.mxu0 0.0
        %534 = vmatprep.subr.mxu0 0.0
        %535 = vmatpush1.msra.mxu0 0.0
        %536 = vmatprep.subr.mxu0 0.0
        %537 = vmatpush1.msra.mxu0 0.0
        %538 = vmatprep.subr.mxu0 0.0
        %539 = vmatpush1.msra.mxu0 0.0
        %540 = vmatprep.subr.mxu0 0.0
        %541 = vmatpush1.msra.mxu0 0.0
        %542 = vmatprep.subr.mxu0 0.0
        %543 = vmatpush1.msra.mxu0 0.0
        %544 = vmatprep.subr.mxu0 0.0
        %545 = vmatpush1.msra.mxu0 0.0
        %546 = vmatprep.subr.mxu0 0.0
        %547 = vmatpush1.msra.mxu0 0.0
        %548 = vmatprep.subr.mxu0 0.0
        %549 = vmatpush1.msra.mxu0 0.0
        %550 = vmatprep.subr.mxu0 0.0
        %551 = vmatpush1.msra.mxu0 0.0
        %552 = vmatprep.subr.mxu0 0.0
        %553 = vmatpush1.msra.mxu0 0.0
        %554 = vmatprep.subr.mxu0 0.0
        %555 = vmatpush1.msra.mxu0 0.0
        %556 = vmatprep.subr.mxu0 0.0
        %557 = vmatpush1.msra.mxu0 0.0
        %558 = vmatprep.subr.mxu0 0.0
        %559 = vmatpush1.msra.mxu0 0.0
        %560 = vmatprep.subr.mxu0 0.0
        %561 = vmatpush1.msra.mxu0 0.0
        %562 = vmatprep.subr.mxu0 0.0
        %563 = vmatpush1.msra.mxu0 0.0
        %564 = vmatprep.subr.mxu0 0.0
        %565 = vmatpush1.msra.mxu0 0.0
        %566 = vmatprep.subr.mxu0 0.0
        %567 = vmatpush1.msra.mxu0 0.0
        %568 = vmatprep.subr.mxu0 0.0
        %569 = vmatpush1.msra.mxu0 0.0
        %570 = vmatprep.subr.mxu0 0.0
        %571 = vmatpush1.msra.mxu0 0.0
        %572 = vmatprep.subr.mxu0 0.0
        %573 = vmatpush1.msra.mxu0 0.0
        %574 = vmatprep.subr.mxu0 0.0
        %575 = vmatpush1.msra.mxu0 0.0
        %576 = vmatprep.subr.mxu0 0.0
        %577 = vmatpush1.msra.mxu0 0.0
        %578 = vmatprep.subr.mxu0 0.0
        %579 = vmatpush1.msra.mxu0 0.0
        %580 = vmatprep.subr.mxu0 0.0
        %581 = vmatpush1.msra.mxu0 0.0
        %582 = vmatprep.mubr.f32.mxu0 0.0
        %583 = vmatmul.mubr.f32.gmra.mrb[0].mxu0 %v516
        %v584 = vpop.f32.mrb[0].mxu0
        %v585 = vadd.f32 0.0, %v584
        %v586 = vpop.f32.mrb[0].mxu0
        %587 = vdwg.mxu0
        %v588 = vadd.s32 %v352, 1
        %vm589 = vcmp.lt.s32.totalorder %v588, 0
        %v590 = vsub.s32 0, %v588
        %v591 = vsel %vm589, %v590, %v588
        %vm592 = vcmp.ge.s32.totalorder %v591, 16
        %v593 = vsub.s32 30, %v591
        %v594 = vsel %vm592, %v593, %v591
        %vm595 = vcmp.eq.s32.totalorder %v349, %v594
        %vm596 = vcmp.eq.s32.totalorder %v350, %v594
        %v597 = vsel %vm595, 1, 0
        %v598 = vsel %vm596, 1, 0
        %v599 = vcvt.s32.f32 %v597
        %v600 = vcvt.s32.f32 %v598
        %v602 = vsel %vm440, %v585, 0
        %604 = vmatprep.subr.mxu0 0.0
        %605 = vmatpush1.msra.mxu0 %v599
        %606 = vmatprep.subr.mxu0 0.0
        %607 = vmatpush1.msra.mxu0 %v600
        %608 = vmatprep.subr.mxu0 0.0
        %609 = vmatpush1.msra.mxu0 0.0
        %610 = vmatprep.subr.mxu0 0.0
        %611 = vmatpush1.msra.mxu0 0.0
        %612 = vmatprep.subr.mxu0 0.0
        %613 = vmatpush1.msra.mxu0 0.0
        %614 = vmatprep.subr.mxu0 0.0
        %615 = vmatpush1.msra.mxu0 0.0
        %616 = vmatprep.subr.mxu0 0.0
        %617 = vmatpush1.msra.mxu0 0.0
        %618 = vmatprep.subr.mxu0 0.0
        %619 = vmatpush1.msra.mxu0 0.0
        %620 = vmatprep.subr.mxu0 0.0
        %621 = vmatpush1.msra.mxu0 0.0
        %622 = vmatprep.subr.mxu0 0.0
        %623 = vmatpush1.msra.mxu0 0.0
        %624 = vmatprep.subr.mxu0 0.0
        %625 = vmatpush1.msra.mxu0 0.0
        %626 = vmatprep.subr.mxu0 0.0
        %627 = vmatpush1.msra.mxu0 0.0
        %628 = vmatprep.subr.mxu0 0.0
        %629 = vmatpush1.msra.mxu0 0.0
        %630 = vmatprep.subr.mxu0 0.0
        %631 = vmatpush1.msra.mxu0 0.0
        %632 = vmatprep.subr.mxu0 0.0
        %633 = vmatpush1.msra.mxu0 0.0
        %634 = vmatprep.subr.mxu0 0.0
        %635 = vmatpush1.msra.mxu0 0.0
        %636 = vmatprep.subr.mxu0 0.0
        %637 = vmatpush1.msra.mxu0 0.0
        %638 = vmatprep.subr.mxu0 0.0
        %639 = vmatpush1.msra.mxu0 0.0
        %640 = vmatprep.subr.mxu0 0.0
        %641 = vmatpush1.msra.mxu0 0.0
        %642 = vmatprep.subr.mxu0 0.0
        %643 = vmatpush1.msra.mxu0 0.0
        %644 = vmatprep.subr.mxu0 0.0
        %645 = vmatpush1.msra.mxu0 0.0
        %646 = vmatprep.subr.mxu0 0.0
        %647 = vmatpush1.msra.mxu0 0.0
        %648 = vmatprep.subr.mxu0 0.0
        %649 = vmatpush1.msra.mxu0 0.0
        %650 = vmatprep.subr.mxu0 0.0
        %651 = vmatpush1.msra.mxu0 0.0
        %652 = vmatprep.subr.mxu0 0.0
        %653 = vmatpush1.msra.mxu0 0.0
        %654 = vmatprep.subr.mxu0 0.0
        %655 = vmatpush1.msra.mxu0 0.0
        %656 = vmatprep.subr.mxu0 0.0
        %657 = vmatpush1.msra.mxu0 0.0
        %658 = vmatprep.subr.mxu0 0.0
        %659 = vmatpush1.msra.mxu0 0.0
        %660 = vmatprep.subr.mxu0 0.0
        %661 = vmatpush1.msra.mxu0 0.0
        %662 = vmatprep.subr.mxu0 0.0
        %663 = vmatpush1.msra.mxu0 0.0
        %664 = vmatprep.subr.mxu0 0.0
        %665 = vmatpush1.msra.mxu0 0.0
        %666 = vmatprep.subr.mxu0 0.0
        %667 = vmatpush1.msra.mxu0 0.0
        %668 = vmatprep.mubr.f32.mxu0 0.0
        %669 = vmatmul.mubr.f32.gmra.mrb[0].mxu0 %v602
        %v670 = vpop.f32.mrb[0].mxu0
        %v671 = vadd.f32 0.0, %v670
        %v672 = vpop.f32.mrb[0].mxu0
        %673 = vdwg.mxu0
        %v674 = vadd.f32 %v511, %v671
        %675 = vset.pattern.permute.xlu0 1
        %676 = vperm.xlu0 %675, %v186
        %v677 = vpop.permute.xlu0 %676
        %v679 = vadd.f32 %v674, %v677
        %v680 = vmax.f32 %v679, 0.0
        %v681 = vld [vmem:[%s1 + $0x20] sm:$0xff]
        %v682 = vld [vmem:[%s1 + $0x28] sm:$0xff]
        %v684 = vsel %vm274, %v681, 0
        %v687 = vsel %vm274, %v682, 0
        %689 = vmatprep.subr.mxu0 0.0
        %690 = vmatpush1.msra.mxu0 %v680
        %691 = vmatprep.subr.mxu0 0.0
        %692 = vmatpush1.msra.mxu0 0.0
        %693 = vmatprep.subr.mxu0 0.0
        %694 = vmatpush1.msra.mxu0 0.0
        %695 = vmatprep.subr.mxu0 0.0
        %696 = vmatpush1.msra.mxu0 0.0
        %697 = vmatprep.subr.mxu0 0.0
        %698 = vmatpush1.msra.mxu0 0.0
        %699 = vmatprep.subr.mxu0 0.0
        %700 = vmatpush1.msra.mxu0 0.0
        %701 = vmatprep.subr.mxu0 0.0
        %702 = vmatpush1.msra.mxu0 0.0
        %703 = vmatprep.subr.mxu0 0.0
        %704 = vmatpush1.msra.mxu0 0.0
        %705 = vmatprep.subr.mxu0 0.0
        %706 = vmatpush1.msra.mxu0 0.0
        %707 = vmatprep.subr.mxu0 0.0
        %708 = vmatpush1.msra.mxu0 0.0
        %709 = vmatprep.subr.mxu0 0.0
        %710 = vmatpush1.msra.mxu0 0.0
        %711 = vmatprep.subr.mxu0 0.0
        %712 = vmatpush1.msra.mxu0 0.0
        %713 = vmatprep.subr.mxu0 0.0
        %714 = vmatpush1.msra.mxu0 0.0
        %715 = vmatprep.subr.mxu0 0.0
        %716 = vmatpush1.msra.mxu0 0.0
        %717 = vmatprep.subr.mxu0 0.0
        %718 = vmatpush1.msra.mxu0 0.0
        %719 = vmatprep.subr.mxu0 0.0
        %720 = vmatpush1.msra.mxu0 0.0
        %721 = vmatprep.subr.mxu0 0.0
        %722 = vmatpush1.msra.mxu0 0.0
        %723 = vmatprep.subr.mxu0 0.0
        %724 = vmatpush1.msra.mxu0 0.0
        %725 = vmatprep.subr.mxu0 0.0
        %726 = vmatpush1.msra.mxu0 0.0
        %727 = vmatprep.subr.mxu0 0.0
        %728 = vmatpush1.msra.mxu0 0.0
        %729 = vmatprep.subr.mxu0 0.0
        %730 = vmatpush1.msra.mxu0 0.0
        %731 = vmatprep.subr.mxu0 0.0
        %732 = vmatpush1.msra.mxu0 0.0
        %733 = vmatprep.subr.mxu0 0.0
        %734 = vmatpush1.msra.mxu0 0.0
        %735 = vmatprep.subr.mxu0 0.0
        %736 = vmatpush1.msra.mxu0 0.0
        %737 = vmatprep.subr.mxu0 0.0
        %738 = vmatpush1.msra.mxu0 0.0
        %739 = vmatprep.subr.mxu0 0.0
        %740 = vmatpush1.msra.mxu0 0.0
        %741 = vmatprep.subr.mxu0 0.0
        %742 = vmatpush1.msra.mxu0 0.0
        %743 = vmatprep.subr.mxu0 0.0
        %744 = vmatpush1.msra.mxu0 0.0
        %745 = vmatprep.subr.mxu0 0.0
        %746 = vmatpush1.msra.mxu0 0.0
        %747 = vmatprep.subr.mxu0 0.0
        %748 = vmatpush1.msra.mxu0 0.0
        %749 = vmatprep.subr.mxu0 0.0
        %750 = vmatpush1.msra.mxu0 0.0
        %751 = vmatprep.subr.mxu0 0.0
        %752 = vmatpush1.msra.mxu0 0.0
        %753 = vmatprep.mubr.f32.mxu0 0.0
        %754 = vmatmul.mubr.f32.gmra.mrb[0].mxu0 %v684
        %v755 = vpop.f32.mrb[0].mxu0
        %v756 = vadd.f32 0.0, %v755
        %v757 = vpop.f32.mrb[0].mxu0
        %758 = vmatprep.mubr.f32.mxu0 0.0
        %759 = vmatmul.mubr.f32.gmra.mrb[0].mxu0 %v687
        %v760 = vpop.f32.mrb[0].mxu0
        %v761 = vadd.f32 0.0, %v760
        %v762 = vpop.f32.mrb[0].mxu0
        %763 = vdwg.mxu0
        %v764 = vld [vmem:[%s1 + $0x30] sm:$0xff]
        %v765 = vld [vmem:[%s1 + $0x38] sm:$0xff]
        %v767 = vsel %vm274, %v764, 0
        %v770 = vsel %vm274, %v765, 0
        %772 = vmatprep.subr.mxu0 0.0
        %773 = vmatpush1.msra.mxu0 %v680
        %774 = vmatprep.subr.mxu0 0.0
        %775 = vmatpush1.msra.mxu0 0.0
        %776 = vmatprep.subr.mxu0 0.0
        %777 = vmatpush1.msra.mxu0 0.0
        %778 = vmatprep.subr.mxu0 0.0
        %779 = vmatpush1.msra.mxu0 0.0
        %780 = vmatprep.subr.mxu0 0.0
        %781 = vmatpush1.msra.mxu0 0.0
        %782 = vmatprep.subr.mxu0 0.0
        %783 = vmatpush1.msra.mxu0 0.0
        %784 = vmatprep.subr.mxu0 0.0
        %785 = vmatpush1.msra.mxu0 0.0
        %786 = vmatprep.subr.mxu0 0.0
        %787 = vmatpush1.msra.mxu0 0.0
        %788 = vmatprep.subr.mxu0 0.0
        %789 = vmatpush1.msra.mxu0 0.0
        %790 = vmatprep.subr.mxu0 0.0
        %791 = vmatpush1.msra.mxu0 0.0
        %792 = vmatprep.subr.mxu0 0.0
        %793 = vmatpush1.msra.mxu0 0.0
        %794 = vmatprep.subr.mxu0 0.0
        %795 = vmatpush1.msra.mxu0 0.0
        %796 = vmatprep.subr.mxu0 0.0
        %797 = vmatpush1.msra.mxu0 0.0
        %798 = vmatprep.subr.mxu0 0.0
        %799 = vmatpush1.msra.mxu0 0.0
        %800 = vmatprep.subr.mxu0 0.0
        %801 = vmatpush1.msra.mxu0 0.0
        %802 = vmatprep.subr.mxu0 0.0
        %803 = vmatpush1.msra.mxu0 0.0
        %804 = vmatprep.subr.mxu0 0.0
        %805 = vmatpush1.msra.mxu0 0.0
        %806 = vmatprep.subr.mxu0 0.0
        %807 = vmatpush1.msra.mxu0 0.0
        %808 = vmatprep.subr.mxu0 0.0
        %809 = vmatpush1.msra.mxu0 0.0
        %810 = vmatprep.subr.mxu0 0.0
        %811 = vmatpush1.msra.mxu0 0.0
        %812 = vmatprep.subr.mxu0 0.0
        %813 = vmatpush1.msra.mxu0 0.0
        %814 = vmatprep.subr.mxu0 0.0
        %815 = vmatpush1.msra.mxu0 0.0
        %816 = vmatprep.subr.mxu0 0.0
        %817 = vmatpush1.msra.mxu0 0.0
        %818 = vmatprep.subr.mxu0 0.0
        %819 = vmatpush1.msra.mxu0 0.0
        %820 = vmatprep.subr.mxu0 0.0
        %821 = vmatpush1.msra.mxu0 0.0
        %822 = vmatprep.subr.mxu0 0.0
        %823 = vmatpush1.msra.mxu0 0.0
        %824 = vmatprep.subr.mxu0 0.0
        %825 = vmatpush1.msra.mxu0 0.0
        %826 = vmatprep.subr.mxu0 0.0
        %827 = vmatpush1.msra.mxu0 0.0
        %828 = vmatprep.subr.mxu0 0.0
        %829 = vmatpush1.msra.mxu0 0.0
        %830 = vmatprep.subr.mxu0 0.0
        %831 = vmatpush1.msra.mxu0 0.0
        %832 = vmatprep.subr.mxu0 0.0
        %833 = vmatpush1.msra.mxu0 0.0
        %834 = vmatprep.subr.mxu0 0.0
        %835 = vmatpush1.msra.mxu0 0.0
        %836 = vmatprep.mubr.f32.mxu0 0.0
        %837 = vmatmul.mubr.f32.gmra.mrb[0].mxu0 %v767
        %v838 = vpop.f32.mrb[0].mxu0
        %v839 = vadd.f32 0.0, %v838
        %v840 = vpop.f32.mrb[0].mxu0
        %841 = vmatprep.mubr.f32.mxu0 0.0
        %842 = vmatmul.mubr.f32.gmra.mrb[0].mxu0 %v770
        %v843 = vpop.f32.mrb[0].mxu0
        %v844 = vadd.f32 0.0, %v843
        %v845 = vpop.f32.mrb[0].mxu0
        %846 = vdwg.mxu0
        %v848 = vsel %vm440, %v756, 0
        %v851 = vsel %vm440, %v761, 0
        %853 = vmatprep.subr.mxu0 0.0
        %854 = vmatpush1.msra.mxu0 %v364
        %855 = vmatprep.subr.mxu0 0.0
        %856 = vmatpush1.msra.mxu0 %v365
        %857 = vmatprep.subr.mxu0 0.0
        %858 = vmatpush1.msra.mxu0 0.0
        %859 = vmatprep.subr.mxu0 0.0
        %860 = vmatpush1.msra.mxu0 0.0
        %861 = vmatprep.subr.mxu0 0.0
        %862 = vmatpush1.msra.mxu0 0.0
        %863 = vmatprep.subr.mxu0 0.0
        %864 = vmatpush1.msra.mxu0 0.0
        %865 = vmatprep.subr.mxu0 0.0
        %866 = vmatpush1.msra.mxu0 0.0
        %867 = vmatprep.subr.mxu0 0.0
        %868 = vmatpush1.msra.mxu0 0.0
        %869 = vmatprep.subr.mxu0 0.0
        %870 = vmatpush1.msra.mxu0 0.0
        %871 = vmatprep.subr.mxu0 0.0
        %872 = vmatpush1.msra.mxu0 0.0
        %873 = vmatprep.subr.mxu0 0.0
        %874 = vmatpush1.msra.mxu0 0.0
        %875 = vmatprep.subr.mxu0 0.0
        %876 = vmatpush1.msra.mxu0 0.0
        %877 = vmatprep.subr.mxu0 0.0
        %878 = vmatpush1.msra.mxu0 0.0
        %879 = vmatprep.subr.mxu0 0.0
        %880 = vmatpush1.msra.mxu0 0.0
        %881 = vmatprep.subr.mxu0 0.0
        %882 = vmatpush1.msra.mxu0 0.0
        %883 = vmatprep.subr.mxu0 0.0
        %884 = vmatpush1.msra.mxu0 0.0
        %885 = vmatprep.subr.mxu0 0.0
        %886 = vmatpush1.msra.mxu0 0.0
        %887 = vmatprep.subr.mxu0 0.0
        %888 = vmatpush1.msra.mxu0 0.0
        %889 = vmatprep.subr.mxu0 0.0
        %890 = vmatpush1.msra.mxu0 0.0
        %891 = vmatprep.subr.mxu0 0.0
        %892 = vmatpush1.msra.mxu0 0.0
        %893 = vmatprep.subr.mxu0 0.0
        %894 = vmatpush1.msra.mxu0 0.0
        %895 = vmatprep.subr.mxu0 0.0
        %896 = vmatpush1.msra.mxu0 0.0
        %897 = vmatprep.subr.mxu0 0.0
        %898 = vmatpush1.msra.mxu0 0.0
        %899 = vmatprep.subr.mxu0 0.0
        %900 = vmatpush1.msra.mxu0 0.0
        %901 = vmatprep.subr.mxu0 0.0
        %902 = vmatpush1.msra.mxu0 0.0
        %903 = vmatprep.subr.mxu0 0.0
        %904 = vmatpush1.msra.mxu0 0.0
        %905 = vmatprep.subr.mxu0 0.0
        %906 = vmatpush1.msra.mxu0 0.0
        %907 = vmatprep.subr.mxu0 0.0
        %908 = vmatpush1.msra.mxu0 0.0
        %909 = vmatprep.subr.mxu0 0.0
        %910 = vmatpush1.msra.mxu0 0.0
        %911 = vmatprep.subr.mxu0 0.0
        %912 = vmatpush1.msra.mxu0 0.0
        %913 = vmatprep.subr.mxu0 0.0
        %914 = vmatpush1.msra.mxu0 0.0
        %915 = vmatprep.subr.mxu0 0.0
        %916 = vmatpush1.msra.mxu0 0.0
        %917 = vmatprep.mubr.f32.mxu0 0.0
        %918 = vmatmul.mubr.f32.gmra.mrb[0].mxu0 %v848
        %v919 = vpop.f32.mrb[0].mxu0
        %v920 = vadd.f32 %v839, %v919
        %v921 = vpop.f32.mrb[0].mxu0
        %922 = vmatprep.mubr.f32.mxu0 0.0
        %923 = vmatmul.mubr.f32.gmra.mrb[0].mxu0 %v851
        %v924 = vpop.f32.mrb[0].mxu0
        %v925 = vadd.f32 %v844, %v924
        %v926 = vpop.f32.mrb[0].mxu0
        %927 = vdwg.mxu0
        %v928 = vld [vmem:[%s1 + $0x40] sm:$0xff]
        %v929 = vld [vmem:[%s1 + $0x48] sm:$0xff]
        %v931 = vsel %vm274, %v928, 0
        %v934 = vsel %vm274, %v929, 0
        %936 = vmatprep.subr.mxu0 0.0
        %937 = vmatpush1.msra.mxu0 %v680
        %938 = vmatprep.subr.mxu0 0.0
        %939 = vmatpush1.msra.mxu0 0.0
        %940 = vmatprep.subr.mxu0 0.0
        %941 = vmatpush1.msra.mxu0 0.0
        %942 = vmatprep.subr.mxu0 0.0
        %943 = vmatpush1.msra.mxu0 0.0
        %944 = vmatprep.subr.mxu0 0.0
        %945 = vmatpush1.msra.mxu0 0.0
        %946 = vmatprep.subr.mxu0 0.0
        %947 = vmatpush1.msra.mxu0 0.0
        %948 = vmatprep.subr.mxu0 0.0
        %949 = vmatpush1.msra.mxu0 0.0
        %950 = vmatprep.subr.mxu0 0.0
        %951 = vmatpush1.msra.mxu0 0.0
        %952 = vmatprep.subr.mxu0 0.0
        %953 = vmatpush1.msra.mxu0 0.0
        %954 = vmatprep.subr.mxu0 0.0
        %955 = vmatpush1.msra.mxu0 0.0
        %956 = vmatprep.subr.mxu0 0.0
        %957 = vmatpush1.msra.mxu0 0.0
        %958 = vmatprep.subr.mxu0 0.0
        %959 = vmatpush1.msra.mxu0 0.0
        %960 = vmatprep.subr.mxu0 0.0
        %961 = vmatpush1.msra.mxu0 0.0
        %962 = vmatprep.subr.mxu0 0.0
        %963 = vmatpush1.msra.mxu0 0.0
        %964 = vmatprep.subr.mxu0 0.0
        %965 = vmatpush1.msra.mxu0 0.0
        %966 = vmatprep.subr.mxu0 0.0
        %967 = vmatpush1.msra.mxu0 0.0
        %968 = vmatprep.subr.mxu0 0.0
        %969 = vmatpush1.msra.mxu0 0.0
        %970 = vmatprep.subr.mxu0 0.0
        %971 = vmatpush1.msra.mxu0 0.0
        %972 = vmatprep.subr.mxu0 0.0
        %973 = vmatpush1.msra.mxu0 0.0
        %974 = vmatprep.subr.mxu0 0.0
        %975 = vmatpush1.msra.mxu0 0.0
        %976 = vmatprep.subr.mxu0 0.0
        %977 = vmatpush1.msra.mxu0 0.0
        %978 = vmatprep.subr.mxu0 0.0
        %979 = vmatpush1.msra.mxu0 0.0
        %980 = vmatprep.subr.mxu0 0.0
        %981 = vmatpush1.msra.mxu0 0.0
        %982 = vmatprep.subr.mxu0 0.0
        %983 = vmatpush1.msra.mxu0 0.0
        %984 = vmatprep.subr.mxu0 0.0
        %985 = vmatpush1.msra.mxu0 0.0
        %986 = vmatprep.subr.mxu0 0.0
        %987 = vmatpush1.msra.mxu0 0.0
        %988 = vmatprep.subr.mxu0 0.0
        %989 = vmatpush1.msra.mxu0 0.0
        %990 = vmatprep.subr.mxu0 0.0
        %991 = vmatpush1.msra.mxu0 0.0
        %992 = vmatprep.subr.mxu0 0.0
        %993 = vmatpush1.msra.mxu0 0.0
        %994 = vmatprep.subr.mxu0 0.0
        %995 = vmatpush1.msra.mxu0 0.0
        %996 = vmatprep.subr.mxu0 0.0
        %997 = vmatpush1.msra.mxu0 0.0
        %998 = vmatprep.subr.mxu0 0.0
        %999 = vmatpush1.msra.mxu0 0.0
        %1000 = vmatprep.mubr.f32.mxu0 0.0
        %1001 = vmatmul.mubr.f32.gmra.mrb[0].mxu0 %v931
        %v1002 = vpop.f32.mrb[0].mxu0
        %v1003 = vadd.f32 0.0, %v1002
        %v1004 = vpop.f32.mrb[0].mxu0
        %1005 = vmatprep.mubr.f32.mxu0 0.0
        %1006 = vmatmul.mubr.f32.gmra.mrb[0].mxu0 %v934
        %v1007 = vpop.f32.mrb[0].mxu0
        %v1008 = vadd.f32 0.0, %v1007
        %v1009 = vpop.f32.mrb[0].mxu0
        %1010 = vdwg.mxu0
        %v1012 = vsel %vm440, %v1003, 0
        %v1015 = vsel %vm440, %v1008, 0
        %1017 = vmatprep.subr.mxu0 0.0
        %1018 = vmatpush1.msra.mxu0 %v599
        %1019 = vmatprep.subr.mxu0 0.0
        %1020 = vmatpush1.msra.mxu0 %v600
        %1021 = vmatprep.subr.mxu0 0.0
        %1022 = vmatpush1.msra.mxu0 0.0
        %1023 = vmatprep.subr.mxu0 0.0
        %1024 = vmatpush1.msra.mxu0 0.0
        %1025 = vmatprep.subr.mxu0 0.0
        %1026 = vmatpush1.msra.mxu0 0.0
        %1027 = vmatprep.subr.mxu0 0.0
        %1028 = vmatpush1.msra.mxu0 0.0
        %1029 = vmatprep.subr.mxu0 0.0
        %1030 = vmatpush1.msra.mxu0 0.0
        %1031 = vmatprep.subr.mxu0 0.0
        %1032 = vmatpush1.msra.mxu0 0.0
        %1033 = vmatprep.subr.mxu0 0.0
        %1034 = vmatpush1.msra.mxu0 0.0
        %1035 = vmatprep.subr.mxu0 0.0
        %1036 = vmatpush1.msra.mxu0 0.0
        %1037 = vmatprep.subr.mxu0 0.0
        %1038 = vmatpush1.msra.mxu0 0.0
        %1039 = vmatprep.subr.mxu0 0.0
        %1040 = vmatpush1.msra.mxu0 0.0
        %1041 = vmatprep.subr.mxu0 0.0
        %1042 = vmatpush1.msra.mxu0 0.0
        %1043 = vmatprep.subr.mxu0 0.0
        %1044 = vmatpush1.msra.mxu0 0.0
        %1045 = vmatprep.subr.mxu0 0.0
        %1046 = vmatpush1.msra.mxu0 0.0
        %1047 = vmatprep.subr.mxu0 0.0
        %1048 = vmatpush1.msra.mxu0 0.0
        %1049 = vmatprep.subr.mxu0 0.0
        %1050 = vmatpush1.msra.mxu0 0.0
        %1051 = vmatprep.subr.mxu0 0.0
        %1052 = vmatpush1.msra.mxu0 0.0
        %1053 = vmatprep.subr.mxu0 0.0
        %1054 = vmatpush1.msra.mxu0 0.0
        %1055 = vmatprep.subr.mxu0 0.0
        %1056 = vmatpush1.msra.mxu0 0.0
        %1057 = vmatprep.subr.mxu0 0.0
        %1058 = vmatpush1.msra.mxu0 0.0
        %1059 = vmatprep.subr.mxu0 0.0
        %1060 = vmatpush1.msra.mxu0 0.0
        %1061 = vmatprep.subr.mxu0 0.0
        %1062 = vmatpush1.msra.mxu0 0.0
        %1063 = vmatprep.subr.mxu0 0.0
        %1064 = vmatpush1.msra.mxu0 0.0
        %1065 = vmatprep.subr.mxu0 0.0
        %1066 = vmatpush1.msra.mxu0 0.0
        %1067 = vmatprep.subr.mxu0 0.0
        %1068 = vmatpush1.msra.mxu0 0.0
        %1069 = vmatprep.subr.mxu0 0.0
        %1070 = vmatpush1.msra.mxu0 0.0
        %1071 = vmatprep.subr.mxu0 0.0
        %1072 = vmatpush1.msra.mxu0 0.0
        %1073 = vmatprep.subr.mxu0 0.0
        %1074 = vmatpush1.msra.mxu0 0.0
        %1075 = vmatprep.subr.mxu0 0.0
        %1076 = vmatpush1.msra.mxu0 0.0
        %1077 = vmatprep.subr.mxu0 0.0
        %1078 = vmatpush1.msra.mxu0 0.0
        %1079 = vmatprep.subr.mxu0 0.0
        %1080 = vmatpush1.msra.mxu0 0.0
        %1081 = vmatprep.mubr.f32.mxu0 0.0
        %1082 = vmatmul.mubr.f32.gmra.mrb[0].mxu0 %v1012
        %v1083 = vpop.f32.mrb[0].mxu0
        %v1084 = vadd.f32 0.0, %v1083
        %v1085 = vpop.f32.mrb[0].mxu0
        %1086 = vmatprep.mubr.f32.mxu0 0.0
        %1087 = vmatmul.mubr.f32.gmra.mrb[0].mxu0 %v1015
        %v1088 = vpop.f32.mrb[0].mxu0
        %v1089 = vadd.f32 0.0, %v1088
        %v1090 = vpop.f32.mrb[0].mxu0
        %1091 = vdwg.mxu0
        %v1092 = vadd.f32 %v920, %v1084
        %v1093 = vadd.f32 %v925, %v1089
        %1094 = vset.pattern.permute.xlu0 2
        %1095 = vperm.xlu0 %1094, %v186
        %v1096 = vpop.permute.xlu0 %1095
        %1099 = vset.pattern.permute.xlu0 2
        %1100 = vperm.xlu0 %1099, %v187
        %v1101 = vpop.permute.xlu0 %1100
        %v1103 = vadd.f32 %v1092, %v1096
        %v1104 = vadd.f32 %v1093, %v1101
        %v1105 = vmax.f32 %v1103, 0.0
        %v1106 = vmax.f32 %v1104, 0.0
        %v1107 = vadd.f32 %v1105, %v270
        %v1108 = vmul.u32 %v349, 2
        %v1109 = vmul.u32 %v350, 2
        %vm1110 = vcmp.eq.s32.totalorder %v352, %v1108
        %vm1111 = vcmp.eq.s32.totalorder %v352, %v1109
        %v1112 = vsel %vm1110, 1, 0
        %v1113 = vsel %vm1111, 1, 0
        %v1114 = vcvt.s32.f32 %v1112
        %v1115 = vcvt.s32.f32 %v1113
        %v1116 = vadd.f32 %v1106, %v270
        %v1117 = vadd.s32 %v1108, 1
        %v1118 = vadd.s32 %v1109, 1
        %vm1119 = vcmp.eq.s32.totalorder %v352, %v1117
        %vm1120 = vcmp.eq.s32.totalorder %v352, %v1118
        %v1121 = vsel %vm1119, 1, 0
        %v1122 = vsel %vm1120, 1, 0
        %v1123 = vcvt.s32.f32 %v1121
        %v1124 = vcvt.s32.f32 %v1122
        %v1126 = vsel %vm440, %v1116, 0
        %1128 = vmatprep.subr.mxu0 0.0
        %1129 = vmatpush1.msra.mxu0 %v1123
        %1130 = vmatprep.subr.mxu0 0.0
        %1131 = vmatpush1.msra.mxu0 %v1124
        %1132 = vmatprep.subr.mxu0 0.0
        %1133 = vmatpush1.msra.mxu0 0.0
        %1134 = vmatprep.subr.mxu0 0.0
        %1135 = vmatpush1.msra.mxu0 0.0
        %1136 = vmatprep.subr.mxu0 0.0
        %1137 = vmatpush1.msra.mxu0 0.0
        %1138 = vmatprep.subr.mxu0 0.0
        %1139 = vmatpush1.msra.mxu0 0.0
        %1140 = vmatprep.subr.mxu0 0.0
        %1141 = vmatpush1.msra.mxu0 0.0
        %1142 = vmatprep.subr.mxu0 0.0
        %1143 = vmatpush1.msra.mxu0 0.0
        %1144 = vmatprep.subr.mxu0 0.0
        %1145 = vmatpush1.msra.mxu0 0.0
        %1146 = vmatprep.subr.mxu0 0.0
        %1147 = vmatpush1.msra.mxu0 0.0
        %1148 = vmatprep.subr.mxu0 0.0
        %1149 = vmatpush1.msra.mxu0 0.0
        %1150 = vmatprep.subr.mxu0 0.0
        %1151 = vmatpush1.msra.mxu0 0.0
        %1152 = vmatprep.subr.mxu0 0.0
        %1153 = vmatpush1.msra.mxu0 0.0
        %1154 = vmatprep.subr.mxu0 0.0
        %1155 = vmatpush1.msra.mxu0 0.0
        %1156 = vmatprep.subr.mxu0 0.0
        %1157 = vmatpush1.msra.mxu0 0.0
        %1158 = vmatprep.subr.mxu0 0.0
        %1159 = vmatpush1.msra.mxu0 0.0
        %1160 = vmatprep.subr.mxu0 0.0
        %1161 = vmatpush1.msra.mxu0 0.0
        %1162 = vmatprep.subr.mxu0 0.0
        %1163 = vmatpush1.msra.mxu0 0.0
        %1164 = vmatprep.subr.mxu0 0.0
        %1165 = vmatpush1.msra.mxu0 0.0
        %1166 = vmatprep.subr.mxu0 0.0
        %1167 = vmatpush1.msra.mxu0 0.0
        %1168 = vmatprep.subr.mxu0 0.0
        %1169 = vmatpush1.msra.mxu0 0.0
        %1170 = vmatprep.subr.mxu0 0.0
        %1171 = vmatpush1.msra.mxu0 0.0
        %1172 = vmatprep.subr.mxu0 0.0
        %1173 = vmatpush1.msra.mxu0 0.0
        %1174 = vmatprep.subr.mxu0 0.0
        %1175 = vmatpush1.msra.mxu0 0.0
        %1176 = vmatprep.subr.mxu0 0.0
        %1177 = vmatpush1.msra.mxu0 0.0
        %1178 = vmatprep.subr.mxu0 0.0
        %1179 = vmatpush1.msra.mxu0 0.0
        %1180 = vmatprep.subr.mxu0 0.0
        %1181 = vmatpush1.msra.mxu0 0.0
        %1182 = vmatprep.subr.mxu0 0.0
        %1183 = vmatpush1.msra.mxu0 0.0
        %1184 = vmatprep.subr.mxu0 0.0
        %1185 = vmatpush1.msra.mxu0 0.0
        %1186 = vmatprep.subr.mxu0 0.0
        %1187 = vmatpush1.msra.mxu0 0.0
        %1188 = vmatprep.subr.mxu0 0.0
        %1189 = vmatpush1.msra.mxu0 0.0
        %1190 = vmatprep.subr.mxu0 0.0
        %1191 = vmatpush1.msra.mxu0 0.0
        %1192 = vmatprep.mubr.f32.mxu0 0.0
        %1193 = vmatmul.mubr.f32.gmra.mrb[0].mxu0 %v1126
        %v1194 = vpop.f32.mrb[0].mxu0
        %v1195 = vadd.f32 0.0, %v1194
        %v1196 = vpop.f32.mrb[0].mxu0
        %1197 = vdwg.mxu0
        %v1199 = vsel %vm440, %v1107, 0
        %1201 = vmatprep.subr.mxu0 0.0
        %1202 = vmatpush1.msra.mxu0 %v1114
        %1203 = vmatprep.subr.mxu0 0.0
        %1204 = vmatpush1.msra.mxu0 %v1115
        %1205 = vmatprep.subr.mxu0 0.0
        %1206 = vmatpush1.msra.mxu0 0.0
        %1207 = vmatprep.subr.mxu0 0.0
        %1208 = vmatpush1.msra.mxu0 0.0
        %1209 = vmatprep.subr.mxu0 0.0
        %1210 = vmatpush1.msra.mxu0 0.0
        %1211 = vmatprep.subr.mxu0 0.0
        %1212 = vmatpush1.msra.mxu0 0.0
        %1213 = vmatprep.subr.mxu0 0.0
        %1214 = vmatpush1.msra.mxu0 0.0
        %1215 = vmatprep.subr.mxu0 0.0
        %1216 = vmatpush1.msra.mxu0 0.0
        %1217 = vmatprep.subr.mxu0 0.0
        %1218 = vmatpush1.msra.mxu0 0.0
        %1219 = vmatprep.subr.mxu0 0.0
        %1220 = vmatpush1.msra.mxu0 0.0
        %1221 = vmatprep.subr.mxu0 0.0
        %1222 = vmatpush1.msra.mxu0 0.0
        %1223 = vmatprep.subr.mxu0 0.0
        %1224 = vmatpush1.msra.mxu0 0.0
        %1225 = vmatprep.subr.mxu0 0.0
        %1226 = vmatpush1.msra.mxu0 0.0
        %1227 = vmatprep.subr.mxu0 0.0
        %1228 = vmatpush1.msra.mxu0 0.0
        %1229 = vmatprep.subr.mxu0 0.0
        %1230 = vmatpush1.msra.mxu0 0.0
        %1231 = vmatprep.subr.mxu0 0.0
        %1232 = vmatpush1.msra.mxu0 0.0
        %1233 = vmatprep.subr.mxu0 0.0
        %1234 = vmatpush1.msra.mxu0 0.0
        %1235 = vmatprep.subr.mxu0 0.0
        %1236 = vmatpush1.msra.mxu0 0.0
        %1237 = vmatprep.subr.mxu0 0.0
        %1238 = vmatpush1.msra.mxu0 0.0
        %1239 = vmatprep.subr.mxu0 0.0
        %1240 = vmatpush1.msra.mxu0 0.0
        %1241 = vmatprep.subr.mxu0 0.0
        %1242 = vmatpush1.msra.mxu0 0.0
        %1243 = vmatprep.subr.mxu0 0.0
        %1244 = vmatpush1.msra.mxu0 0.0
        %1245 = vmatprep.subr.mxu0 0.0
        %1246 = vmatpush1.msra.mxu0 0.0
        %1247 = vmatprep.subr.mxu0 0.0
        %1248 = vmatpush1.msra.mxu0 0.0
        %1249 = vmatprep.subr.mxu0 0.0
        %1250 = vmatpush1.msra.mxu0 0.0
        %1251 = vmatprep.subr.mxu0 0.0
        %1252 = vmatpush1.msra.mxu0 0.0
        %1253 = vmatprep.subr.mxu0 0.0
        %1254 = vmatpush1.msra.mxu0 0.0
        %1255 = vmatprep.subr.mxu0 0.0
        %1256 = vmatpush1.msra.mxu0 0.0
        %1257 = vmatprep.subr.mxu0 0.0
        %1258 = vmatpush1.msra.mxu0 0.0
        %1259 = vmatprep.subr.mxu0 0.0
        %1260 = vmatpush1.msra.mxu0 0.0
        %1261 = vmatprep.subr.mxu0 0.0
        %1262 = vmatpush1.msra.mxu0 0.0
        %1263 = vmatprep.subr.mxu0 0.0
        %1264 = vmatpush1.msra.mxu0 0.0
        %1265 = vmatprep.mubr.f32.mxu0 0.0
        %1266 = vmatmul.mubr.f32.gmra.mrb[0].mxu0 %v1199
        %v1267 = vpop.f32.mrb[0].mxu0
        %v1268 = vadd.f32 %v1195, %v1267
        %v1269 = vpop.f32.mrb[0].mxu0
        %1270 = vdwg.mxu0
        %v1271 = vld [vmem:[%s1 + $0x50] sm:$0xff]
        %v1273 = vsel %vm274, %v1271, 0
        %1275 = vmatprep.subr.mxu0 0.0
        %1276 = vmatpush1.msra.mxu0 %v1268
        %1277 = vmatprep.subr.mxu0 0.0
        %1278 = vmatpush1.msra.mxu0 0.0
        %1279 = vmatprep.subr.mxu0 0.0
        %1280 = vmatpush1.msra.mxu0 0.0
        %1281 = vmatprep.subr.mxu0 0.0
        %1282 = vmatpush1.msra.mxu0 0.0
        %1283 = vmatprep.subr.mxu0 0.0
        %1284 = vmatpush1.msra.mxu0 0.0
        %1285 = vmatprep.subr.mxu0 0.0
        %1286 = vmatpush1.msra.mxu0 0.0
        %1287 = vmatprep.subr.mxu0 0.0
        %1288 = vmatpush1.msra.mxu0 0.0
        %1289 = vmatprep.subr.mxu0 0.0
        %1290 = vmatpush1.msra.mxu0 0.0
        %1291 = vmatprep.subr.mxu0 0.0
        %1292 = vmatpush1.msra.mxu0 0.0
        %1293 = vmatprep.subr.mxu0 0.0
        %1294 = vmatpush1.msra.mxu0 0.0
        %1295 = vmatprep.subr.mxu0 0.0
        %1296 = vmatpush1.msra.mxu0 0.0
        %1297 = vmatprep.subr.mxu0 0.0
        %1298 = vmatpush1.msra.mxu0 0.0
        %1299 = vmatprep.subr.mxu0 0.0
        %1300 = vmatpush1.msra.mxu0 0.0
        %1301 = vmatprep.subr.mxu0 0.0
        %1302 = vmatpush1.msra.mxu0 0.0
        %1303 = vmatprep.subr.mxu0 0.0
        %1304 = vmatpush1.msra.mxu0 0.0
        %1305 = vmatprep.subr.mxu0 0.0
        %1306 = vmatpush1.msra.mxu0 0.0
        %1307 = vmatprep.subr.mxu0 0.0
        %1308 = vmatpush1.msra.mxu0 0.0
        %1309 = vmatprep.subr.mxu0 0.0
        %1310 = vmatpush1.msra.mxu0 0.0
        %1311 = vmatprep.subr.mxu0 0.0
        %1312 = vmatpush1.msra.mxu0 0.0
        %1313 = vmatprep.subr.mxu0 0.0
        %1314 = vmatpush1.msra.mxu0 0.0
        %1315 = vmatprep.subr.mxu0 0.0
        %1316 = vmatpush1.msra.mxu0 0.0
        %1317 = vmatprep.subr.mxu0 0.0
        %1318 = vmatpush1.msra.mxu0 0.0
        %1319 = vmatprep.subr.mxu0 0.0
        %1320 = vmatpush1.msra.mxu0 0.0
        %1321 = vmatprep.subr.mxu0 0.0
        %1322 = vmatpush1.msra.mxu0 0.0
        %1323 = vmatprep.subr.mxu0 0.0
        %1324 = vmatpush1.msra.mxu0 0.0
        %1325 = vmatprep.subr.mxu0 0.0
        %1326 = vmatpush1.msra.mxu0 0.0
        %1327 = vmatprep.subr.mxu0 0.0
        %1328 = vmatpush1.msra.mxu0 0.0
        %1329 = vmatprep.subr.mxu0 0.0
        %1330 = vmatpush1.msra.mxu0 0.0
        %1331 = vmatprep.subr.mxu0 0.0
        %1332 = vmatpush1.msra.mxu0 0.0
        %1333 = vmatprep.subr.mxu0 0.0
        %1334 = vmatpush1.msra.mxu0 0.0
        %1335 = vmatprep.subr.mxu0 0.0
        %1336 = vmatpush1.msra.mxu0 0.0
        %1337 = vmatprep.subr.mxu0 0.0
        %1338 = vmatpush1.msra.mxu0 0.0
        %1339 = vmatprep.mubr.f32.mxu0 0.0
        %1340 = vmatmul.mubr.f32.gmra.mrb[0].mxu0 %v1273
        %v1341 = vpop.f32.mrb[0].mxu0
        %v1342 = vadd.f32 0.0, %v1341
        %v1343 = vpop.f32.mrb[0].mxu0
        %1344 = vdwg.mxu0
        %v1345 = vadd.s32 %v349, 16
        %v1346 = vadd.s32 %v349, 24
        %vm1347 = vcmp.ge.s32.totalorder %v356, 32
        %v1348 = vsub.s32 62, %v356
        %v1349 = vsel %vm1347, %v1348, %v356
        %vm1350 = vcmp.eq.s32.totalorder %v349, %v1349
        %vm1351 = vcmp.eq.s32.totalorder %v350, %v1349
        %vm1352 = vcmp.eq.s32.totalorder %v1345, %v1349
        %vm1353 = vcmp.eq.s32.totalorder %v1346, %v1349
        %v1354 = vsel %vm1350, 1, 0
        %v1355 = vsel %vm1351, 1, 0
        %v1356 = vsel %vm1352, 1, 0
        %v1357 = vsel %vm1353, 1, 0
        %v1358 = vcvt.s32.f32 %v1354
        %v1359 = vcvt.s32.f32 %v1355
        %v1360 = vcvt.s32.f32 %v1356
        %v1361 = vcvt.s32.f32 %v1357
        %v1362 = vld [vmem:[%s1 + $0x58] sm:$0xff]
        %v1364 = vsel %vm274, %v1362, 0
        %1366 = vmatprep.subr.mxu0 0.0
        %1367 = vmatpush1.msra.mxu0 %v1268
        %1368 = vmatprep.subr.mxu0 0.0
        %1369 = vmatpush1.msra.mxu0 0.0
        %1370 = vmatprep.subr.mxu0 0.0
        %1371 = vmatpush1.msra.mxu0 0.0
        %1372 = vmatprep.subr.mxu0 0.0
        %1373 = vmatpush1.msra.mxu0 0.0
        %1374 = vmatprep.subr.mxu0 0.0
        %1375 = vmatpush1.msra.mxu0 0.0
        %1376 = vmatprep.subr.mxu0 0.0
        %1377 = vmatpush1.msra.mxu0 0.0
        %1378 = vmatprep.subr.mxu0 0.0
        %1379 = vmatpush1.msra.mxu0 0.0
        %1380 = vmatprep.subr.mxu0 0.0
        %1381 = vmatpush1.msra.mxu0 0.0
        %1382 = vmatprep.subr.mxu0 0.0
        %1383 = vmatpush1.msra.mxu0 0.0
        %1384 = vmatprep.subr.mxu0 0.0
        %1385 = vmatpush1.msra.mxu0 0.0
        %1386 = vmatprep.subr.mxu0 0.0
        %1387 = vmatpush1.msra.mxu0 0.0
        %1388 = vmatprep.subr.mxu0 0.0
        %1389 = vmatpush1.msra.mxu0 0.0
        %1390 = vmatprep.subr.mxu0 0.0
        %1391 = vmatpush1.msra.mxu0 0.0
        %1392 = vmatprep.subr.mxu0 0.0
        %1393 = vmatpush1.msra.mxu0 0.0
        %1394 = vmatprep.subr.mxu0 0.0
        %1395 = vmatpush1.msra.mxu0 0.0
        %1396 = vmatprep.subr.mxu0 0.0
        %1397 = vmatpush1.msra.mxu0 0.0
        %1398 = vmatprep.subr.mxu0 0.0
        %1399 = vmatpush1.msra.mxu0 0.0
        %1400 = vmatprep.subr.mxu0 0.0
        %1401 = vmatpush1.msra.mxu0 0.0
        %1402 = vmatprep.subr.mxu0 0.0
        %1403 = vmatpush1.msra.mxu0 0.0
        %1404 = vmatprep.subr.mxu0 0.0
        %1405 = vmatpush1.msra.mxu0 0.0
        %1406 = vmatprep.subr.mxu0 0.0
        %1407 = vmatpush1.msra.mxu0 0.0
        %1408 = vmatprep.subr.mxu0 0.0
        %1409 = vmatpush1.msra.mxu0 0.0
        %1410 = vmatprep.subr.mxu0 0.0
        %1411 = vmatpush1.msra.mxu0 0.0
        %1412 = vmatprep.subr.mxu0 0.0
        %1413 = vmatpush1.msra.mxu0 0.0
        %1414 = vmatprep.subr.mxu0 0.0
        %1415 = vmatpush1.msra.mxu0 0.0
        %1416 = vmatprep.subr.mxu0 0.0
        %1417 = vmatpush1.msra.mxu0 0.0
        %1418 = vmatprep.subr.mxu0 0.0
        %1419 = vmatpush1.msra.mxu0 0.0
        %1420 = vmatprep.subr.mxu0 0.0
        %1421 = vmatpush1.msra.mxu0 0.0
        %1422 = vmatprep.subr.mxu0 0.0
        %1423 = vmatpush1.msra.mxu0 0.0
        %1424 = vmatprep.subr.mxu0 0.0
        %1425 = vmatpush1.msra.mxu0 0.0
        %1426 = vmatprep.subr.mxu0 0.0
        %1427 = vmatpush1.msra.mxu0 0.0
        %1428 = vmatprep.subr.mxu0 0.0
        %1429 = vmatpush1.msra.mxu0 0.0
        %1430 = vmatprep.mubr.f32.mxu0 0.0
        %1431 = vmatmul.mubr.f32.gmra.mrb[0].mxu0 %v1364
        %v1432 = vpop.f32.mrb[0].mxu0
        %v1433 = vadd.f32 0.0, %v1432
        %v1434 = vpop.f32.mrb[0].mxu0
        %1435 = vdwg.mxu0
        %vm1436 = vcmask 261120
        %v1438 = vsel %vm1436, %v1342, 0
        %1440 = vmatprep.subr.mxu0 0.0
        %1441 = vmatpush1.msra.mxu0 %v1358
        %1442 = vmatprep.subr.mxu0 0.0
        %1443 = vmatpush1.msra.mxu0 %v1359
        %1444 = vmatprep.subr.mxu0 0.0
        %1445 = vmatpush1.msra.mxu0 %v1360
        %1446 = vmatprep.subr.mxu0 0.0
        %1447 = vmatpush1.msra.mxu0 %v1361
        %1448 = vmatprep.subr.mxu0 0.0
        %1449 = vmatpush1.msra.mxu0 0.0
        %1450 = vmatprep.subr.mxu0 0.0
        %1451 = vmatpush1.msra.mxu0 0.0
        %1452 = vmatprep.subr.mxu0 0.0
        %1453 = vmatpush1.msra.mxu0 0.0
        %1454 = vmatprep.subr.mxu0 0.0
        %1455 = vmatpush1.msra.mxu0 0.0
        %1456 = vmatprep.subr.mxu0 0.0
        %1457 = vmatpush1.msra.mxu0 0.0
        %1458 = vmatprep.subr.mxu0 0.0
        %1459 = vmatpush1.msra.mxu0 0.0
        %1460 = vmatprep.subr.mxu0 0.0
        %1461 = vmatpush1.msra.mxu0 0.0
        %1462 = vmatprep.subr.mxu0 0.0
        %1463 = vmatpush1.msra.mxu0 0.0
        %1464 = vmatprep.subr.mxu0 0.0
        %1465 = vmatpush1.msra.mxu0 0.0
        %1466 = vmatprep.subr.mxu0 0.0
        %1467 = vmatpush1.msra.mxu0 0.0
        %1468 = vmatprep.subr.mxu0 0.0
        %1469 = vmatpush1.msra.mxu0 0.0
        %1470 = vmatprep.subr.mxu0 0.0
        %1471 = vmatpush1.msra.mxu0 0.0
        %1472 = vmatprep.subr.mxu0 0.0
        %1473 = vmatpush1.msra.mxu0 0.0
        %1474 = vmatprep.subr.mxu0 0.0
        %1475 = vmatpush1.msra.mxu0 0.0
        %1476 = vmatprep.subr.mxu0 0.0
        %1477 = vmatpush1.msra.mxu0 0.0
        %1478 = vmatprep.subr.mxu0 0.0
        %1479 = vmatpush1.msra.mxu0 0.0
        %1480 = vmatprep.subr.mxu0 0.0
        %1481 = vmatpush1.msra.mxu0 0.0
        %1482 = vmatprep.subr.mxu0 0.0
        %1483 = vmatpush1.msra.mxu0 0.0
        %1484 = vmatprep.subr.mxu0 0.0
        %1485 = vmatpush1.msra.mxu0 0.0
        %1486 = vmatprep.subr.mxu0 0.0
        %1487 = vmatpush1.msra.mxu0 0.0
        %1488 = vmatprep.subr.mxu0 0.0
        %1489 = vmatpush1.msra.mxu0 0.0
        %1490 = vmatprep.subr.mxu0 0.0
        %1491 = vmatpush1.msra.mxu0 0.0
        %1492 = vmatprep.subr.mxu0 0.0
        %1493 = vmatpush1.msra.mxu0 0.0
        %1494 = vmatprep.subr.mxu0 0.0
        %1495 = vmatpush1.msra.mxu0 0.0
        %1496 = vmatprep.subr.mxu0 0.0
        %1497 = vmatpush1.msra.mxu0 0.0
        %1498 = vmatprep.subr.mxu0 0.0
        %1499 = vmatpush1.msra.mxu0 0.0
        %1500 = vmatprep.subr.mxu0 0.0
        %1501 = vmatpush1.msra.mxu0 0.0
        %1502 = vmatprep.subr.mxu0 0.0
        %1503 = vmatpush1.msra.mxu0 0.0
        %1504 = vmatprep.mubr.f32.mxu0 0.0
        %1505 = vmatmul.mubr.f32.gmra.mrb[0].mxu0 %v1438
        %v1506 = vpop.f32.mrb[0].mxu0
        %v1507 = vadd.f32 %v1433, %v1506
        %v1508 = vpop.f32.mrb[0].mxu0
        %1509 = vdwg.mxu0
        %v1510 = vld [vmem:[%s1 + $0x60] sm:$0xff]
        %v1512 = vsel %vm274, %v1510, 0
        %1514 = vmatprep.subr.mxu0 0.0
        %1515 = vmatpush1.msra.mxu0 %v1268
        %1516 = vmatprep.subr.mxu0 0.0
        %1517 = vmatpush1.msra.mxu0 0.0
        %1518 = vmatprep.subr.mxu0 0.0
        %1519 = vmatpush1.msra.mxu0 0.0
        %1520 = vmatprep.subr.mxu0 0.0
        %1521 = vmatpush1.msra.mxu0 0.0
        %1522 = vmatprep.subr.mxu0 0.0
        %1523 = vmatpush1.msra.mxu0 0.0
        %1524 = vmatprep.subr.mxu0 0.0
        %1525 = vmatpush1.msra.mxu0 0.0
        %1526 = vmatprep.subr.mxu0 0.0
        %1527 = vmatpush1.msra.mxu0 0.0
        %1528 = vmatprep.subr.mxu0 0.0
        %1529 = vmatpush1.msra.mxu0 0.0
        %1530 = vmatprep.subr.mxu0 0.0
        %1531 = vmatpush1.msra.mxu0 0.0
        %1532 = vmatprep.subr.mxu0 0.0
        %1533 = vmatpush1.msra.mxu0 0.0
        %1534 = vmatprep.subr.mxu0 0.0
        %1535 = vmatpush1.msra.mxu0 0.0
        %1536 = vmatprep.subr.mxu0 0.0
        %1537 = vmatpush1.msra.mxu0 0.0
        %1538 = vmatprep.subr.mxu0 0.0
        %1539 = vmatpush1.msra.mxu0 0.0
        %1540 = vmatprep.subr.mxu0 0.0
        %1541 = vmatpush1.msra.mxu0 0.0
        %1542 = vmatprep.subr.mxu0 0.0
        %1543 = vmatpush1.msra.mxu0 0.0
        %1544 = vmatprep.subr.mxu0 0.0
        %1545 = vmatpush1.msra.mxu0 0.0
        %1546 = vmatprep.subr.mxu0 0.0
        %1547 = vmatpush1.msra.mxu0 0.0
        %1548 = vmatprep.subr.mxu0 0.0
        %1549 = vmatpush1.msra.mxu0 0.0
        %1550 = vmatprep.subr.mxu0 0.0
        %1551 = vmatpush1.msra.mxu0 0.0
        %1552 = vmatprep.subr.mxu0 0.0
        %1553 = vmatpush1.msra.mxu0 0.0
        %1554 = vmatprep.subr.mxu0 0.0
        %1555 = vmatpush1.msra.mxu0 0.0
        %1556 = vmatprep.subr.mxu0 0.0
        %1557 = vmatpush1.msra.mxu0 0.0
        %1558 = vmatprep.subr.mxu0 0.0
        %1559 = vmatpush1.msra.mxu0 0.0
        %1560 = vmatprep.subr.mxu0 0.0
        %1561 = vmatpush1.msra.mxu0 0.0
        %1562 = vmatprep.subr.mxu0 0.0
        %1563 = vmatpush1.msra.mxu0 0.0
        %1564 = vmatprep.subr.mxu0 0.0
        %1565 = vmatpush1.msra.mxu0 0.0
        %1566 = vmatprep.subr.mxu0 0.0
        %1567 = vmatpush1.msra.mxu0 0.0
        %1568 = vmatprep.subr.mxu0 0.0
        %1569 = vmatpush1.msra.mxu0 0.0
        %1570 = vmatprep.subr.mxu0 0.0
        %1571 = vmatpush1.msra.mxu0 0.0
        %1572 = vmatprep.subr.mxu0 0.0
        %1573 = vmatpush1.msra.mxu0 0.0
        %1574 = vmatprep.subr.mxu0 0.0
        %1575 = vmatpush1.msra.mxu0 0.0
        %1576 = vmatprep.subr.mxu0 0.0
        %1577 = vmatpush1.msra.mxu0 0.0
        %1578 = vmatprep.mubr.f32.mxu0 0.0
        %1579 = vmatmul.mubr.f32.gmra.mrb[0].mxu0 %v1512
        %v1580 = vpop.f32.mrb[0].mxu0
        %v1581 = vadd.f32 0.0, %v1580
        %v1582 = vpop.f32.mrb[0].mxu0
        %1583 = vdwg.mxu0
        %vm1584 = vcmp.ge.s32.totalorder %v591, 32
        %v1585 = vsub.s32 62, %v591
        %v1586 = vsel %vm1584, %v1585, %v591
        %vm1587 = vcmp.eq.s32.totalorder %v349, %v1586
        %vm1588 = vcmp.eq.s32.totalorder %v350, %v1586
        %vm1589 = vcmp.eq.s32.totalorder %v1345, %v1586
        %vm1590 = vcmp.eq.s32.totalorder %v1346, %v1586
        %v1591 = vsel %vm1587, 1, 0
        %v1592 = vsel %vm1588, 1, 0
        %v1593 = vsel %vm1589, 1, 0
        %v1594 = vsel %vm1590, 1, 0
        %v1595 = vcvt.s32.f32 %v1591
        %v1596 = vcvt.s32.f32 %v1592
        %v1597 = vcvt.s32.f32 %v1593
        %v1598 = vcvt.s32.f32 %v1594
        %v1600 = vsel %vm1436, %v1581, 0
        %1602 = vmatprep.subr.mxu0 0.0
        %1603 = vmatpush1.msra.mxu0 %v1595
        %1604 = vmatprep.subr.mxu0 0.0
        %1605 = vmatpush1.msra.mxu0 %v1596
        %1606 = vmatprep.subr.mxu0 0.0
        %1607 = vmatpush1.msra.mxu0 %v1597
        %1608 = vmatprep.subr.mxu0 0.0
        %1609 = vmatpush1.msra.mxu0 %v1598
        %1610 = vmatprep.subr.mxu0 0.0
        %1611 = vmatpush1.msra.mxu0 0.0
        %1612 = vmatprep.subr.mxu0 0.0
        %1613 = vmatpush1.msra.mxu0 0.0
        %1614 = vmatprep.subr.mxu0 0.0
        %1615 = vmatpush1.msra.mxu0 0.0
        %1616 = vmatprep.subr.mxu0 0.0
        %1617 = vmatpush1.msra.mxu0 0.0
        %1618 = vmatprep.subr.mxu0 0.0
        %1619 = vmatpush1.msra.mxu0 0.0
        %1620 = vmatprep.subr.mxu0 0.0
        %1621 = vmatpush1.msra.mxu0 0.0
        %1622 = vmatprep.subr.mxu0 0.0
        %1623 = vmatpush1.msra.mxu0 0.0
        %1624 = vmatprep.subr.mxu0 0.0
        %1625 = vmatpush1.msra.mxu0 0.0
        %1626 = vmatprep.subr.mxu0 0.0
        %1627 = vmatpush1.msra.mxu0 0.0
        %1628 = vmatprep.subr.mxu0 0.0
        %1629 = vmatpush1.msra.mxu0 0.0
        %1630 = vmatprep.subr.mxu0 0.0
        %1631 = vmatpush1.msra.mxu0 0.0
        %1632 = vmatprep.subr.mxu0 0.0
        %1633 = vmatpush1.msra.mxu0 0.0
        %1634 = vmatprep.subr.mxu0 0.0
        %1635 = vmatpush1.msra.mxu0 0.0
        %1636 = vmatprep.subr.mxu0 0.0
        %1637 = vmatpush1.msra.mxu0 0.0
        %1638 = vmatprep.subr.mxu0 0.0
        %1639 = vmatpush1.msra.mxu0 0.0
        %1640 = vmatprep.subr.mxu0 0.0
        %1641 = vmatpush1.msra.mxu0 0.0
        %1642 = vmatprep.subr.mxu0 0.0
        %1643 = vmatpush1.msra.mxu0 0.0
        %1644 = vmatprep.subr.mxu0 0.0
        %1645 = vmatpush1.msra.mxu0 0.0
        %1646 = vmatprep.subr.mxu0 0.0
        %1647 = vmatpush1.msra.mxu0 0.0
        %1648 = vmatprep.subr.mxu0 0.0
        %1649 = vmatpush1.msra.mxu0 0.0
        %1650 = vmatprep.subr.mxu0 0.0
        %1651 = vmatpush1.msra.mxu0 0.0
        %1652 = vmatprep.subr.mxu0 0.0
        %1653 = vmatpush1.msra.mxu0 0.0
        %1654 = vmatprep.subr.mxu0 0.0
        %1655 = vmatpush1.msra.mxu0 0.0
        %1656 = vmatprep.subr.mxu0 0.0
        %1657 = vmatpush1.msra.mxu0 0.0
        %1658 = vmatprep.subr.mxu0 0.0
        %1659 = vmatpush1.msra.mxu0 0.0
        %1660 = vmatprep.subr.mxu0 0.0
        %1661 = vmatpush1.msra.mxu0 0.0
        %1662 = vmatprep.subr.mxu0 0.0
        %1663 = vmatpush1.msra.mxu0 0.0
        %1664 = vmatprep.subr.mxu0 0.0
        %1665 = vmatpush1.msra.mxu0 0.0
        %1666 = vmatprep.mubr.f32.mxu0 0.0
        %1667 = vmatmul.mubr.f32.gmra.mrb[0].mxu0 %v1600
        %v1668 = vpop.f32.mrb[0].mxu0
        %v1669 = vadd.f32 0.0, %v1668
        %v1670 = vpop.f32.mrb[0].mxu0
        %1671 = vdwg.mxu0
        %v1672 = vadd.f32 %v1507, %v1669
        %1673 = vset.pattern.permute.xlu0 3
        %1674 = vperm.xlu0 %1673, %v186
        %v1675 = vpop.permute.xlu0 %1674
        %v1677 = vadd.f32 %v1672, %v1675
        %v1678 = vmax.f32 %v1677, 0.0
        %v1679 = vld [vmem:[%s1 + $0x68] sm:$0xff]
        %v1681 = vsel %vm274, %v1679, 0
        %1683 = vmatprep.subr.mxu0 0.0
        %1684 = vmatpush1.msra.mxu0 %v1678
        %1685 = vmatprep.subr.mxu0 0.0
        %1686 = vmatpush1.msra.mxu0 0.0
        %1687 = vmatprep.subr.mxu0 0.0
        %1688 = vmatpush1.msra.mxu0 0.0
        %1689 = vmatprep.subr.mxu0 0.0
        %1690 = vmatpush1.msra.mxu0 0.0
        %1691 = vmatprep.subr.mxu0 0.0
        %1692 = vmatpush1.msra.mxu0 0.0
        %1693 = vmatprep.subr.mxu0 0.0
        %1694 = vmatpush1.msra.mxu0 0.0
        %1695 = vmatprep.subr.mxu0 0.0
        %1696 = vmatpush1.msra.mxu0 0.0
        %1697 = vmatprep.subr.mxu0 0.0
        %1698 = vmatpush1.msra.mxu0 0.0
        %1699 = vmatprep.subr.mxu0 0.0
        %1700 = vmatpush1.msra.mxu0 0.0
        %1701 = vmatprep.subr.mxu0 0.0
        %1702 = vmatpush1.msra.mxu0 0.0
        %1703 = vmatprep.subr.mxu0 0.0
        %1704 = vmatpush1.msra.mxu0 0.0
        %1705 = vmatprep.subr.mxu0 0.0
        %1706 = vmatpush1.msra.mxu0 0.0
        %1707 = vmatprep.subr.mxu0 0.0
        %1708 = vmatpush1.msra.mxu0 0.0
        %1709 = vmatprep.subr.mxu0 0.0
        %1710 = vmatpush1.msra.mxu0 0.0
        %1711 = vmatprep.subr.mxu0 0.0
        %1712 = vmatpush1.msra.mxu0 0.0
        %1713 = vmatprep.subr.mxu0 0.0
        %1714 = vmatpush1.msra.mxu0 0.0
        %1715 = vmatprep.subr.mxu0 0.0
        %1716 = vmatpush1.msra.mxu0 0.0
        %1717 = vmatprep.subr.mxu0 0.0
        %1718 = vmatpush1.msra.mxu0 0.0
        %1719 = vmatprep.subr.mxu0 0.0
        %1720 = vmatpush1.msra.mxu0 0.0
        %1721 = vmatprep.subr.mxu0 0.0
        %1722 = vmatpush1.msra.mxu0 0.0
        %1723 = vmatprep.subr.mxu0 0.0
        %1724 = vmatpush1.msra.mxu0 0.0
        %1725 = vmatprep.subr.mxu0 0.0
        %1726 = vmatpush1.msra.mxu0 0.0
        %1727 = vmatprep.subr.mxu0 0.0
        %1728 = vmatpush1.msra.mxu0 0.0
        %1729 = vmatprep.subr.mxu0 0.0
        %1730 = vmatpush1.msra.mxu0 0.0
        %1731 = vmatprep.subr.mxu0 0.0
        %1732 = vmatpush1.msra.mxu0 0.0
        %1733 = vmatprep.subr.mxu0 0.0
        %1734 = vmatpush1.msra.mxu0 0.0
        %1735 = vmatprep.subr.mxu0 0.0
        %1736 = vmatpush1.msra.mxu0 0.0
        %1737 = vmatprep.subr.mxu0 0.0
        %1738 = vmatpush1.msra.mxu0 0.0
        %1739 = vmatprep.subr.mxu0 0.0
        %1740 = vmatpush1.msra.mxu0 0.0
        %1741 = vmatprep.subr.mxu0 0.0
        %1742 = vmatpush1.msra.mxu0 0.0
        %1743 = vmatprep.subr.mxu0 0.0
        %1744 = vmatpush1.msra.mxu0 0.0
        %1745 = vmatprep.subr.mxu0 0.0
        %1746 = vmatpush1.msra.mxu0 0.0
        %1747 = vmatprep.mubr.f32.mxu0 0.0
        %1748 = vmatmul.mubr.f32.gmra.mrb[0].mxu0 %v1681
        %v1749 = vpop.f32.mrb[0].mxu0
        %v1750 = vadd.f32 0.0, %v1749
        %v1751 = vpop.f32.mrb[0].mxu0
        %1752 = vdwg.mxu0
        %v1753 = vld [vmem:[%s1 + $0x70] sm:$0xff]
        %v1755 = vsel %vm274, %v1753, 0
        %1757 = vmatprep.subr.mxu0 0.0
        %1758 = vmatpush1.msra.mxu0 %v1678
        %1759 = vmatprep.subr.mxu0 0.0
        %1760 = vmatpush1.msra.mxu0 0.0
        %1761 = vmatprep.subr.mxu0 0.0
        %1762 = vmatpush1.msra.mxu0 0.0
        %1763 = vmatprep.subr.mxu0 0.0
        %1764 = vmatpush1.msra.mxu0 0.0
        %1765 = vmatprep.subr.mxu0 0.0
        %1766 = vmatpush1.msra.mxu0 0.0
        %1767 = vmatprep.subr.mxu0 0.0
        %1768 = vmatpush1.msra.mxu0 0.0
        %1769 = vmatprep.subr.mxu0 0.0
        %1770 = vmatpush1.msra.mxu0 0.0
        %1771 = vmatprep.subr.mxu0 0.0
        %1772 = vmatpush1.msra.mxu0 0.0
        %1773 = vmatprep.subr.mxu0 0.0
        %1774 = vmatpush1.msra.mxu0 0.0
        %1775 = vmatprep.subr.mxu0 0.0
        %1776 = vmatpush1.msra.mxu0 0.0
        %1777 = vmatprep.subr.mxu0 0.0
        %1778 = vmatpush1.msra.mxu0 0.0
        %1779 = vmatprep.subr.mxu0 0.0
        %1780 = vmatpush1.msra.mxu0 0.0
        %1781 = vmatprep.subr.mxu0 0.0
        %1782 = vmatpush1.msra.mxu0 0.0
        %1783 = vmatprep.subr.mxu0 0.0
        %1784 = vmatpush1.msra.mxu0 0.0
        %1785 = vmatprep.subr.mxu0 0.0
        %1786 = vmatpush1.msra.mxu0 0.0
        %1787 = vmatprep.subr.mxu0 0.0
        %1788 = vmatpush1.msra.mxu0 0.0
        %1789 = vmatprep.subr.mxu0 0.0
        %1790 = vmatpush1.msra.mxu0 0.0
        %1791 = vmatprep.subr.mxu0 0.0
        %1792 = vmatpush1.msra.mxu0 0.0
        %1793 = vmatprep.subr.mxu0 0.0
        %1794 = vmatpush1.msra.mxu0 0.0
        %1795 = vmatprep.subr.mxu0 0.0
        %1796 = vmatpush1.msra.mxu0 0.0
        %1797 = vmatprep.subr.mxu0 0.0
        %1798 = vmatpush1.msra.mxu0 0.0
        %1799 = vmatprep.subr.mxu0 0.0
        %1800 = vmatpush1.msra.mxu0 0.0
        %1801 = vmatprep.subr.mxu0 0.0
        %1802 = vmatpush1.msra.mxu0 0.0
        %1803 = vmatprep.subr.mxu0 0.0
        %1804 = vmatpush1.msra.mxu0 0.0
        %1805 = vmatprep.subr.mxu0 0.0
        %1806 = vmatpush1.msra.mxu0 0.0
        %1807 = vmatprep.subr.mxu0 0.0
        %1808 = vmatpush1.msra.mxu0 0.0
        %1809 = vmatprep.subr.mxu0 0.0
        %1810 = vmatpush1.msra.mxu0 0.0
        %1811 = vmatprep.subr.mxu0 0.0
        %1812 = vmatpush1.msra.mxu0 0.0
        %1813 = vmatprep.subr.mxu0 0.0
        %1814 = vmatpush1.msra.mxu0 0.0
        %1815 = vmatprep.subr.mxu0 0.0
        %1816 = vmatpush1.msra.mxu0 0.0
        %1817 = vmatprep.subr.mxu0 0.0
        %1818 = vmatpush1.msra.mxu0 0.0
        %1819 = vmatprep.subr.mxu0 0.0
        %1820 = vmatpush1.msra.mxu0 0.0
        %1821 = vmatprep.mubr.f32.mxu0 0.0
        %1822 = vmatmul.mubr.f32.gmra.mrb[0].mxu0 %v1755
        %v1823 = vpop.f32.mrb[0].mxu0
        %v1824 = vadd.f32 0.0, %v1823
        %v1825 = vpop.f32.mrb[0].mxu0
        %1826 = vdwg.mxu0
        %v1828 = vsel %vm1436, %v1750, 0
        %1830 = vmatprep.subr.mxu0 0.0
        %1831 = vmatpush1.msra.mxu0 %v1358
        %1832 = vmatprep.subr.mxu0 0.0
        %1833 = vmatpush1.msra.mxu0 %v1359
        %1834 = vmatprep.subr.mxu0 0.0
        %1835 = vmatpush1.msra.mxu0 %v1360
        %1836 = vmatprep.subr.mxu0 0.0
        %1837 = vmatpush1.msra.mxu0 %v1361
        %1838 = vmatprep.subr.mxu0 0.0
        %1839 = vmatpush1.msra.mxu0 0.0
        %1840 = vmatprep.subr.mxu0 0.0
        %1841 = vmatpush1.msra.mxu0 0.0
        %1842 = vmatprep.subr.mxu0 0.0
        %1843 = vmatpush1.msra.mxu0 0.0
        %1844 = vmatprep.subr.mxu0 0.0
        %1845 = vmatpush1.msra.mxu0 0.0
        %1846 = vmatprep.subr.mxu0 0.0
        %1847 = vmatpush1.msra.mxu0 0.0
        %1848 = vmatprep.subr.mxu0 0.0
        %1849 = vmatpush1.msra.mxu0 0.0
        %1850 = vmatprep.subr.mxu0 0.0
        %1851 = vmatpush1.msra.mxu0 0.0
        %1852 = vmatprep.subr.mxu0 0.0
        %1853 = vmatpush1.msra.mxu0 0.0
        %1854 = vmatprep.subr.mxu0 0.0
        %1855 = vmatpush1.msra.mxu0 0.0
        %1856 = vmatprep.subr.mxu0 0.0
        %1857 = vmatpush1.msra.mxu0 0.0
        %1858 = vmatprep.subr.mxu0 0.0
        %1859 = vmatpush1.msra.mxu0 0.0
        %1860 = vmatprep.subr.mxu0 0.0
        %1861 = vmatpush1.msra.mxu0 0.0
        %1862 = vmatprep.subr.mxu0 0.0
        %1863 = vmatpush1.msra.mxu0 0.0
        %1864 = vmatprep.subr.mxu0 0.0
        %1865 = vmatpush1.msra.mxu0 0.0
        %1866 = vmatprep.subr.mxu0 0.0
        %1867 = vmatpush1.msra.mxu0 0.0
        %1868 = vmatprep.subr.mxu0 0.0
        %1869 = vmatpush1.msra.mxu0 0.0
        %1870 = vmatprep.subr.mxu0 0.0
        %1871 = vmatpush1.msra.mxu0 0.0
        %1872 = vmatprep.subr.mxu0 0.0
        %1873 = vmatpush1.msra.mxu0 0.0
        %1874 = vmatprep.subr.mxu0 0.0
        %1875 = vmatpush1.msra.mxu0 0.0
        %1876 = vmatprep.subr.mxu0 0.0
        %1877 = vmatpush1.msra.mxu0 0.0
        %1878 = vmatprep.subr.mxu0 0.0
        %1879 = vmatpush1.msra.mxu0 0.0
        %1880 = vmatprep.subr.mxu0 0.0
        %1881 = vmatpush1.msra.mxu0 0.0
        %1882 = vmatprep.subr.mxu0 0.0
        %1883 = vmatpush1.msra.mxu0 0.0
        %1884 = vmatprep.subr.mxu0 0.0
        %1885 = vmatpush1.msra.mxu0 0.0
        %1886 = vmatprep.subr.mxu0 0.0
        %1887 = vmatpush1.msra.mxu0 0.0
        %1888 = vmatprep.subr.mxu0 0.0
        %1889 = vmatpush1.msra.mxu0 0.0
        %1890 = vmatprep.subr.mxu0 0.0
        %1891 = vmatpush1.msra.mxu0 0.0
        %1892 = vmatprep.subr.mxu0 0.0
        %1893 = vmatpush1.msra.mxu0 0.0
        %1894 = vmatprep.mubr.f32.mxu0 0.0
        %1895 = vmatmul.mubr.f32.gmra.mrb[0].mxu0 %v1828
        %v1896 = vpop.f32.mrb[0].mxu0
        %v1897 = vadd.f32 %v1824, %v1896
        %v1898 = vpop.f32.mrb[0].mxu0
        %1899 = vdwg.mxu0
        %v1900 = vld [vmem:[%s1 + $0x78] sm:$0xff]
        %v1902 = vsel %vm274, %v1900, 0
        %1904 = vmatprep.subr.mxu0 0.0
        %1905 = vmatpush1.msra.mxu0 %v1678
        %1906 = vmatprep.subr.mxu0 0.0
        %1907 = vmatpush1.msra.mxu0 0.0
        %1908 = vmatprep.subr.mxu0 0.0
        %1909 = vmatpush1.msra.mxu0 0.0
        %1910 = vmatprep.subr.mxu0 0.0
        %1911 = vmatpush1.msra.mxu0 0.0
        %1912 = vmatprep.subr.mxu0 0.0
        %1913 = vmatpush1.msra.mxu0 0.0
        %1914 = vmatprep.subr.mxu0 0.0
        %1915 = vmatpush1.msra.mxu0 0.0
        %1916 = vmatprep.subr.mxu0 0.0
        %1917 = vmatpush1.msra.mxu0 0.0
        %1918 = vmatprep.subr.mxu0 0.0
        %1919 = vmatpush1.msra.mxu0 0.0
        %1920 = vmatprep.subr.mxu0 0.0
        %1921 = vmatpush1.msra.mxu0 0.0
        %1922 = vmatprep.subr.mxu0 0.0
        %1923 = vmatpush1.msra.mxu0 0.0
        %1924 = vmatprep.subr.mxu0 0.0
        %1925 = vmatpush1.msra.mxu0 0.0
        %1926 = vmatprep.subr.mxu0 0.0
        %1927 = vmatpush1.msra.mxu0 0.0
        %1928 = vmatprep.subr.mxu0 0.0
        %1929 = vmatpush1.msra.mxu0 0.0
        %1930 = vmatprep.subr.mxu0 0.0
        %1931 = vmatpush1.msra.mxu0 0.0
        %1932 = vmatprep.subr.mxu0 0.0
        %1933 = vmatpush1.msra.mxu0 0.0
        %1934 = vmatprep.subr.mxu0 0.0
        %1935 = vmatpush1.msra.mxu0 0.0
        %1936 = vmatprep.subr.mxu0 0.0
        %1937 = vmatpush1.msra.mxu0 0.0
        %1938 = vmatprep.subr.mxu0 0.0
        %1939 = vmatpush1.msra.mxu0 0.0
        %1940 = vmatprep.subr.mxu0 0.0
        %1941 = vmatpush1.msra.mxu0 0.0
        %1942 = vmatprep.subr.mxu0 0.0
        %1943 = vmatpush1.msra.mxu0 0.0
        %1944 = vmatprep.subr.mxu0 0.0
        %1945 = vmatpush1.msra.mxu0 0.0
        %1946 = vmatprep.subr.mxu0 0.0
        %1947 = vmatpush1.msra.mxu0 0.0
        %1948 = vmatprep.subr.mxu0 0.0
        %1949 = vmatpush1.msra.mxu0 0.0
        %1950 = vmatprep.subr.mxu0 0.0
        %1951 = vmatpush1.msra.mxu0 0.0
        %1952 = vmatprep.subr.mxu0 0.0
        %1953 = vmatpush1.msra.mxu0 0.0
        %1954 = vmatprep.subr.mxu0 0.0
        %1955 = vmatpush1.msra.mxu0 0.0
        %1956 = vmatprep.subr.mxu0 0.0
        %1957 = vmatpush1.msra.mxu0 0.0
        %1958 = vmatprep.subr.mxu0 0.0
        %1959 = vmatpush1.msra.mxu0 0.0
        %1960 = vmatprep.subr.mxu0 0.0
        %1961 = vmatpush1.msra.mxu0 0.0
        %1962 = vmatprep.subr.mxu0 0.0
        %1963 = vmatpush1.msra.mxu0 0.0
        %1964 = vmatprep.subr.mxu0 0.0
        %1965 = vmatpush1.msra.mxu0 0.0
        %1966 = vmatprep.subr.mxu0 0.0
        %1967 = vmatpush1.msra.mxu0 0.0
        %1968 = vmatprep.mubr.f32.mxu0 0.0
        %1969 = vmatmul.mubr.f32.gmra.mrb[0].mxu0 %v1902
        %v1970 = vpop.f32.mrb[0].mxu0
        %v1971 = vadd.f32 0.0, %v1970
        %v1972 = vpop.f32.mrb[0].mxu0
        %1973 = vdwg.mxu0
        %v1975 = vsel %vm1436, %v1971, 0
        %1977 = vmatprep.subr.mxu0 0.0
        %1978 = vmatpush1.msra.mxu0 %v1595
        %1979 = vmatprep.subr.mxu0 0.0
        %1980 = vmatpush1.msra.mxu0 %v1596
        %1981 = vmatprep.subr.mxu0 0.0
        %1982 = vmatpush1.msra.mxu0 %v1597
        %1983 = vmatprep.subr.mxu0 0.0
        %1984 = vmatpush1.msra.mxu0 %v1598
        %1985 = vmatprep.subr.mxu0 0.0
        %1986 = vmatpush1.msra.mxu0 0.0
        %1987 = vmatprep.subr.mxu0 0.0
        %1988 = vmatpush1.msra.mxu0 0.0
        %1989 = vmatprep.subr.mxu0 0.0
        %1990 = vmatpush1.msra.mxu0 0.0
        %1991 = vmatprep.subr.mxu0 0.0
        %1992 = vmatpush1.msra.mxu0 0.0
        %1993 = vmatprep.subr.mxu0 0.0
        %1994 = vmatpush1.msra.mxu0 0.0
        %1995 = vmatprep.subr.mxu0 0.0
        %1996 = vmatpush1.msra.mxu0 0.0
        %1997 = vmatprep.subr.mxu0 0.0
        %1998 = vmatpush1.msra.mxu0 0.0
        %1999 = vmatprep.subr.mxu0 0.0
        %2000 = vmatpush1.msra.mxu0 0.0
        %2001 = vmatprep.subr.mxu0 0.0
        %2002 = vmatpush1.msra.mxu0 0.0
        %2003 = vmatprep.subr.mxu0 0.0
        %2004 = vmatpush1.msra.mxu0 0.0
        %2005 = vmatprep.subr.mxu0 0.0
        %2006 = vmatpush1.msra.mxu0 0.0
        %2007 = vmatprep.subr.mxu0 0.0
        %2008 = vmatpush1.msra.mxu0 0.0
        %2009 = vmatprep.subr.mxu0 0.0
        %2010 = vmatpush1.msra.mxu0 0.0
        %2011 = vmatprep.subr.mxu0 0.0
        %2012 = vmatpush1.msra.mxu0 0.0
        %2013 = vmatprep.subr.mxu0 0.0
        %2014 = vmatpush1.msra.mxu0 0.0
        %2015 = vmatprep.subr.mxu0 0.0
        %2016 = vmatpush1.msra.mxu0 0.0
        %2017 = vmatprep.subr.mxu0 0.0
        %2018 = vmatpush1.msra.mxu0 0.0
        %2019 = vmatprep.subr.mxu0 0.0
        %2020 = vmatpush1.msra.mxu0 0.0
        %2021 = vmatprep.subr.mxu0 0.0
        %2022 = vmatpush1.msra.mxu0 0.0
        %2023 = vmatprep.subr.mxu0 0.0
        %2024 = vmatpush1.msra.mxu0 0.0
        %2025 = vmatprep.subr.mxu0 0.0
        %2026 = vmatpush1.msra.mxu0 0.0
        %2027 = vmatprep.subr.mxu0 0.0
        %2028 = vmatpush1.msra.mxu0 0.0
        %2029 = vmatprep.subr.mxu0 0.0
        %2030 = vmatpush1.msra.mxu0 0.0
        %2031 = vmatprep.subr.mxu0 0.0
        %2032 = vmatpush1.msra.mxu0 0.0
        %2033 = vmatprep.subr.mxu0 0.0
        %2034 = vmatpush1.msra.mxu0 0.0
        %2035 = vmatprep.subr.mxu0 0.0
        %2036 = vmatpush1.msra.mxu0 0.0
        %2037 = vmatprep.subr.mxu0 0.0
        %2038 = vmatpush1.msra.mxu0 0.0
        %2039 = vmatprep.subr.mxu0 0.0
        %2040 = vmatpush1.msra.mxu0 0.0
        %2041 = vmatprep.mubr.f32.mxu0 0.0
        %2042 = vmatmul.mubr.f32.gmra.mrb[0].mxu0 %v1975
        %v2043 = vpop.f32.mrb[0].mxu0
        %v2044 = vadd.f32 0.0, %v2043
        %v2045 = vpop.f32.mrb[0].mxu0
        %2046 = vdwg.mxu0
        %v2047 = vadd.f32 %v1897, %v2044
        %2048 = vset.pattern.permute.xlu0 4
        %2049 = vperm.xlu0 %2048, %v186
        %v2050 = vpop.permute.xlu0 %2049
        %v2052 = vadd.f32 %v2047, %v2050
        %v2053 = vmax.f32 %v2052, 0.0
        %v2054 = vadd.f32 %v2053, %v1268
        %v2055 = vld [vmem:[%s1 + $0x80] sm:$0xff]
        %2056 = vset.pattern.permute.xlu0 5
        %2057 = vperm.xlu0 %2056, %v186
        %v2058 = vpop.permute.xlu0 %2057
        %v2061 = vsel %vm274, %v2055, 0
        %2063 = vmatprep.subr.mxu0 0.0
        %2064 = vmatpush1.msra.mxu0 %v2054
        %2065 = vmatprep.subr.mxu0 0.0
        %2066 = vmatpush1.msra.mxu0 0.0
        %2067 = vmatprep.subr.mxu0 0.0
        %2068 = vmatpush1.msra.mxu0 0.0
        %2069 = vmatprep.subr.mxu0 0.0
        %2070 = vmatpush1.msra.mxu0 0.0
        %2071 = vmatprep.subr.mxu0 0.0
        %2072 = vmatpush1.msra.mxu0 0.0
        %2073 = vmatprep.subr.mxu0 0.0
        %2074 = vmatpush1.msra.mxu0 0.0
        %2075 = vmatprep.subr.mxu0 0.0
        %2076 = vmatpush1.msra.mxu0 0.0
        %2077 = vmatprep.subr.mxu0 0.0
        %2078 = vmatpush1.msra.mxu0 0.0
        %2079 = vmatprep.subr.mxu0 0.0
        %2080 = vmatpush1.msra.mxu0 0.0
        %2081 = vmatprep.subr.mxu0 0.0
        %2082 = vmatpush1.msra.mxu0 0.0
        %2083 = vmatprep.subr.mxu0 0.0
        %2084 = vmatpush1.msra.mxu0 0.0
        %2085 = vmatprep.subr.mxu0 0.0
        %2086 = vmatpush1.msra.mxu0 0.0
        %2087 = vmatprep.subr.mxu0 0.0
        %2088 = vmatpush1.msra.mxu0 0.0
        %2089 = vmatprep.subr.mxu0 0.0
        %2090 = vmatpush1.msra.mxu0 0.0
        %2091 = vmatprep.subr.mxu0 0.0
        %2092 = vmatpush1.msra.mxu0 0.0
        %2093 = vmatprep.subr.mxu0 0.0
        %2094 = vmatpush1.msra.mxu0 0.0
        %2095 = vmatprep.subr.mxu0 0.0
        %2096 = vmatpush1.msra.mxu0 0.0
        %2097 = vmatprep.subr.mxu0 0.0
        %2098 = vmatpush1.msra.mxu0 0.0
        %2099 = vmatprep.subr.mxu0 0.0
        %2100 = vmatpush1.msra.mxu0 0.0
        %2101 = vmatprep.subr.mxu0 0.0
        %2102 = vmatpush1.msra.mxu0 0.0
        %2103 = vmatprep.subr.mxu0 0.0
        %2104 = vmatpush1.msra.mxu0 0.0
        %2105 = vmatprep.subr.mxu0 0.0
        %2106 = vmatpush1.msra.mxu0 0.0
        %2107 = vmatprep.subr.mxu0 0.0
        %2108 = vmatpush1.msra.mxu0 0.0
        %2109 = vmatprep.subr.mxu0 0.0
        %2110 = vmatpush1.msra.mxu0 0.0
        %2111 = vmatprep.subr.mxu0 0.0
        %2112 = vmatpush1.msra.mxu0 0.0
        %2113 = vmatprep.subr.mxu0 0.0
        %2114 = vmatpush1.msra.mxu0 0.0
        %2115 = vmatprep.subr.mxu0 0.0
        %2116 = vmatpush1.msra.mxu0 0.0
        %2117 = vmatprep.subr.mxu0 0.0
        %2118 = vmatpush1.msra.mxu0 0.0
        %2119 = vmatprep.subr.mxu0 0.0
        %2120 = vmatpush1.msra.mxu0 0.0
        %2121 = vmatprep.subr.mxu0 0.0
        %2122 = vmatpush1.msra.mxu0 0.0
        %2123 = vmatprep.subr.mxu0 0.0
        %2124 = vmatpush1.msra.mxu0 0.0
        %2125 = vmatprep.subr.mxu0 0.0
        %2126 = vmatpush1.msra.mxu0 0.0
        %2127 = vmatprep.mubr.f32.mxu0 0.0
        %2128 = vmatmul.mubr.f32.gmra.mrb[0].mxu0 %v2061
        %v2129 = vpop.f32.mrb[0].mxu0
        %v2130 = vadd.f32 %v2058, %v2129
        %v2131 = vpop.f32.mrb[0].mxu0
        %2132 = vdwg.mxu0
        %v2133 = vmax.f32 %v2130, 0.0
        %v2134 = vld [vmem:[%s1 + $0x88] sm:$0xff]
        %2135 = vset.pattern.permute.xlu0 6
        %2136 = vperm.xlu0 %2135, %v186
        %v2137 = vpop.permute.xlu0 %2136
        %v2140 = vsel %vm274, %v2134, 0
        %2142 = vmatprep.subr.mxu0 0.0
        %2143 = vmatpush1.msra.mxu0 %v2133
        %2144 = vmatprep.subr.mxu0 0.0
        %2145 = vmatpush1.msra.mxu0 0.0
        %2146 = vmatprep.subr.mxu0 0.0
        %2147 = vmatpush1.msra.mxu0 0.0
        %2148 = vmatprep.subr.mxu0 0.0
        %2149 = vmatpush1.msra.mxu0 0.0
        %2150 = vmatprep.subr.mxu0 0.0
        %2151 = vmatpush1.msra.mxu0 0.0
        %2152 = vmatprep.subr.mxu0 0.0
        %2153 = vmatpush1.msra.mxu0 0.0
        %2154 = vmatprep.subr.mxu0 0.0
        %2155 = vmatpush1.msra.mxu0 0.0
        %2156 = vmatprep.subr.mxu0 0.0
        %2157 = vmatpush1.msra.mxu0 0.0
        %2158 = vmatprep.subr.mxu0 0.0
        %2159 = vmatpush1.msra.mxu0 0.0
        %2160 = vmatprep.subr.mxu0 0.0
        %2161 = vmatpush1.msra.mxu0 0.0
        %2162 = vmatprep.subr.mxu0 0.0
        %2163 = vmatpush1.msra.mxu0 0.0
        %2164 = vmatprep.subr.mxu0 0.0
        %2165 = vmatpush1.msra.mxu0 0.0
        %2166 = vmatprep.subr.mxu0 0.0
        %2167 = vmatpush1.msra.mxu0 0.0
        %2168 = vmatprep.subr.mxu0 0.0
        %2169 = vmatpush1.msra.mxu0 0.0
        %2170 = vmatprep.subr.mxu0 0.0
        %2171 = vmatpush1.msra.mxu0 0.0
        %2172 = vmatprep.subr.mxu0 0.0
        %2173 = vmatpush1.msra.mxu0 0.0
        %2174 = vmatprep.subr.mxu0 0.0
        %2175 = vmatpush1.msra.mxu0 0.0
        %2176 = vmatprep.subr.mxu0 0.0
        %2177 = vmatpush1.msra.mxu0 0.0
        %2178 = vmatprep.subr.mxu0 0.0
        %2179 = vmatpush1.msra.mxu0 0.0
        %2180 = vmatprep.subr.mxu0 0.0
        %2181 = vmatpush1.msra.mxu0 0.0
        %2182 = vmatprep.subr.mxu0 0.0
        %2183 = vmatpush1.msra.mxu0 0.0
        %2184 = vmatprep.subr.mxu0 0.0
        %2185 = vmatpush1.msra.mxu0 0.0
        %2186 = vmatprep.subr.mxu0 0.0
        %2187 = vmatpush1.msra.mxu0 0.0
        %2188 = vmatprep.subr.mxu0 0.0
        %2189 = vmatpush1.msra.mxu0 0.0
        %2190 = vmatprep.subr.mxu0 0.0
        %2191 = vmatpush1.msra.mxu0 0.0
        %2192 = vmatprep.subr.mxu0 0.0
        %2193 = vmatpush1.msra.mxu0 0.0
        %2194 = vmatprep.subr.mxu0 0.0
        %2195 = vmatpush1.msra.mxu0 0.0
        %2196 = vmatprep.subr.mxu0 0.0
        %2197 = vmatpush1.msra.mxu0 0.0
        %2198 = vmatprep.subr.mxu0 0.0
        %2199 = vmatpush1.msra.mxu0 0.0
        %2200 = vmatprep.subr.mxu0 0.0
        %2201 = vmatpush1.msra.mxu0 0.0
        %2202 = vmatprep.subr.mxu0 0.0
        %2203 = vmatpush1.msra.mxu0 0.0
        %2204 = vmatprep.subr.mxu0 0.0
        %2205 = vmatpush1.msra.mxu0 0.0
        %2206 = vmatprep.mubr.f32.mxu0 0.0
        %2207 = vmatmul.mubr.f32.gmra.mrb[0].mxu0 %v2140
        %v2208 = vpop.f32.mrb[0].mxu0
        %v2209 = vadd.f32 %v2137, %v2208
        %v2210 = vpop.f32.mrb[0].mxu0
        %2211 = vdwg.mxu0
        %v2212 = vmax.f32 %v2209, 0.0
        %v2213 = vadd.f32 %v2054, %v2212
        %v2214 = vld [vmem:[%s1 + $0x90] sm:$0xff]
        %2215 = vset.pattern.permute.xlu0 7
        %2216 = vperm.xlu0 %2215, %v186
        %v2217 = vpop.permute.xlu0 %2216
        %v2220 = vsel %vm274, %v2214, 0
        %2222 = vmatprep.subr.mxu0 0.0
        %2223 = vmatpush1.msra.mxu0 %v2213
        %2224 = vmatprep.subr.mxu0 0.0
        %2225 = vmatpush1.msra.mxu0 0.0
        %2226 = vmatprep.subr.mxu0 0.0
        %2227 = vmatpush1.msra.mxu0 0.0
        %2228 = vmatprep.subr.mxu0 0.0
        %2229 = vmatpush1.msra.mxu0 0.0
        %2230 = vmatprep.subr.mxu0 0.0
        %2231 = vmatpush1.msra.mxu0 0.0
        %2232 = vmatprep.subr.mxu0 0.0
        %2233 = vmatpush1.msra.mxu0 0.0
        %2234 = vmatprep.subr.mxu0 0.0
        %2235 = vmatpush1.msra.mxu0 0.0
        %2236 = vmatprep.subr.mxu0 0.0
        %2237 = vmatpush1.msra.mxu0 0.0
        %2238 = vmatprep.subr.mxu0 0.0
        %2239 = vmatpush1.msra.mxu0 0.0
        %2240 = vmatprep.subr.mxu0 0.0
        %2241 = vmatpush1.msra.mxu0 0.0
        %2242 = vmatprep.subr.mxu0 0.0
        %2243 = vmatpush1.msra.mxu0 0.0
        %2244 = vmatprep.subr.mxu0 0.0
        %2245 = vmatpush1.msra.mxu0 0.0
        %2246 = vmatprep.subr.mxu0 0.0
        %2247 = vmatpush1.msra.mxu0 0.0
        %2248 = vmatprep.subr.mxu0 0.0
        %2249 = vmatpush1.msra.mxu0 0.0
        %2250 = vmatprep.subr.mxu0 0.0
        %2251 = vmatpush1.msra.mxu0 0.0
        %2252 = vmatprep.subr.mxu0 0.0
        %2253 = vmatpush1.msra.mxu0 0.0
        %2254 = vmatprep.subr.mxu0 0.0
        %2255 = vmatpush1.msra.mxu0 0.0
        %2256 = vmatprep.subr.mxu0 0.0
        %2257 = vmatpush1.msra.mxu0 0.0
        %2258 = vmatprep.subr.mxu0 0.0
        %2259 = vmatpush1.msra.mxu0 0.0
        %2260 = vmatprep.subr.mxu0 0.0
        %2261 = vmatpush1.msra.mxu0 0.0
        %2262 = vmatprep.subr.mxu0 0.0
        %2263 = vmatpush1.msra.mxu0 0.0
        %2264 = vmatprep.subr.mxu0 0.0
        %2265 = vmatpush1.msra.mxu0 0.0
        %2266 = vmatprep.subr.mxu0 0.0
        %2267 = vmatpush1.msra.mxu0 0.0
        %2268 = vmatprep.subr.mxu0 0.0
        %2269 = vmatpush1.msra.mxu0 0.0
        %2270 = vmatprep.subr.mxu0 0.0
        %2271 = vmatpush1.msra.mxu0 0.0
        %2272 = vmatprep.subr.mxu0 0.0
        %2273 = vmatpush1.msra.mxu0 0.0
        %2274 = vmatprep.subr.mxu0 0.0
        %2275 = vmatpush1.msra.mxu0 0.0
        %2276 = vmatprep.subr.mxu0 0.0
        %2277 = vmatpush1.msra.mxu0 0.0
        %2278 = vmatprep.subr.mxu0 0.0
        %2279 = vmatpush1.msra.mxu0 0.0
        %2280 = vmatprep.subr.mxu0 0.0
        %2281 = vmatpush1.msra.mxu0 0.0
        %2282 = vmatprep.subr.mxu0 0.0
        %2283 = vmatpush1.msra.mxu0 0.0
        %2284 = vmatprep.subr.mxu0 0.0
        %2285 = vmatpush1.msra.mxu0 0.0
        %2286 = vmatprep.mubr.f32.mxu0 0.0
        %2287 = vmatmul.mubr.f32.gmra.mrb[0].mxu0 %v2220
        %v2288 = vpop.f32.mrb[0].mxu0
        %v2289 = vadd.f32 %v2217, %v2288
        %v2290 = vpop.f32.mrb[0].mxu0
        %2291 = vdwg.mxu0
        %v2292 = vmax.f32 %v2289, 0.0
        %v2293 = vld [vmem:[%s1 + $0x98] sm:$0xff]
        %2294 = vset.pattern.permute.xlu0 8
        %2295 = vperm.xlu0 %2294, %v186
        %v2296 = vpop.permute.xlu0 %2295
        %v2299 = vsel %vm274, %v2293, 0
        %2301 = vmatprep.subr.mxu0 0.0
        %2302 = vmatpush1.msra.mxu0 %v2292
        %2303 = vmatprep.subr.mxu0 0.0
        %2304 = vmatpush1.msra.mxu0 0.0
        %2305 = vmatprep.subr.mxu0 0.0
        %2306 = vmatpush1.msra.mxu0 0.0
        %2307 = vmatprep.subr.mxu0 0.0
        %2308 = vmatpush1.msra.mxu0 0.0
        %2309 = vmatprep.subr.mxu0 0.0
        %2310 = vmatpush1.msra.mxu0 0.0
        %2311 = vmatprep.subr.mxu0 0.0
        %2312 = vmatpush1.msra.mxu0 0.0
        %2313 = vmatprep.subr.mxu0 0.0
        %2314 = vmatpush1.msra.mxu0 0.0
        %2315 = vmatprep.subr.mxu0 0.0
        %2316 = vmatpush1.msra.mxu0 0.0
        %2317 = vmatprep.subr.mxu0 0.0
        %2318 = vmatpush1.msra.mxu0 0.0
        %2319 = vmatprep.subr.mxu0 0.0
        %2320 = vmatpush1.msra.mxu0 0.0
        %2321 = vmatprep.subr.mxu0 0.0
        %2322 = vmatpush1.msra.mxu0 0.0
        %2323 = vmatprep.subr.mxu0 0.0
        %2324 = vmatpush1.msra.mxu0 0.0
        %2325 = vmatprep.subr.mxu0 0.0
        %2326 = vmatpush1.msra.mxu0 0.0
        %2327 = vmatprep.subr.mxu0 0.0
        %2328 = vmatpush1.msra.mxu0 0.0
        %2329 = vmatprep.subr.mxu0 0.0
        %2330 = vmatpush1.msra.mxu0 0.0
        %2331 = vmatprep.subr.mxu0 0.0
        %2332 = vmatpush1.msra.mxu0 0.0
        %2333 = vmatprep.subr.mxu0 0.0
        %2334 = vmatpush1.msra.mxu0 0.0
        %2335 = vmatprep.subr.mxu0 0.0
        %2336 = vmatpush1.msra.mxu0 0.0
        %2337 = vmatprep.subr.mxu0 0.0
        %2338 = vmatpush1.msra.mxu0 0.0
        %2339 = vmatprep.subr.mxu0 0.0
        %2340 = vmatpush1.msra.mxu0 0.0
        %2341 = vmatprep.subr.mxu0 0.0
        %2342 = vmatpush1.msra.mxu0 0.0
        %2343 = vmatprep.subr.mxu0 0.0
        %2344 = vmatpush1.msra.mxu0 0.0
        %2345 = vmatprep.subr.mxu0 0.0
        %2346 = vmatpush1.msra.mxu0 0.0
        %2347 = vmatprep.subr.mxu0 0.0
        %2348 = vmatpush1.msra.mxu0 0.0
        %2349 = vmatprep.subr.mxu0 0.0
        %2350 = vmatpush1.msra.mxu0 0.0
        %2351 = vmatprep.subr.mxu0 0.0
        %2352 = vmatpush1.msra.mxu0 0.0
        %2353 = vmatprep.subr.mxu0 0.0
        %2354 = vmatpush1.msra.mxu0 0.0
        %2355 = vmatprep.subr.mxu0 0.0
        %2356 = vmatpush1.msra.mxu0 0.0
        %2357 = vmatprep.subr.mxu0 0.0
        %2358 = vmatpush1.msra.mxu0 0.0
        %2359 = vmatprep.subr.mxu0 0.0
        %2360 = vmatpush1.msra.mxu0 0.0
        %2361 = vmatprep.subr.mxu0 0.0
        %2362 = vmatpush1.msra.mxu0 0.0
        %2363 = vmatprep.subr.mxu0 0.0
        %2364 = vmatpush1.msra.mxu0 0.0
        %2365 = vmatprep.mubr.f32.mxu0 0.0
        %2366 = vmatmul.mubr.f32.gmra.mrb[0].mxu0 %v2299
        %v2367 = vpop.f32.mrb[0].mxu0
        %v2368 = vadd.f32 %v2296, %v2367
        %v2369 = vpop.f32.mrb[0].mxu0
        %2370 = vdwg.mxu0
        %v2371 = vmax.f32 %v2368, 0.0
        %v2372 = vadd.f32 %v2213, %v2371
        %v2373 = vld [vmem:[%s1 + $0xa0] sm:$0xf]
        %2374 = vset.pattern.permute.xlu0 9
        %2375 = vperm.xlu0 %2374, %v186
        %v2376 = vpop.permute.xlu0 %2375
        %v2379 = vsel %vm274, %v2373, 0
        %2381 = vmatprep.subr.mxu0 0.0
        %2382 = vmatpush1.msra.mxu0 %v2372
        %2383 = vmatprep.subr.mxu0 0.0
        %2384 = vmatpush1.msra.mxu0 0.0
        %2385 = vmatprep.subr.mxu0 0.0
        %2386 = vmatpush1.msra.mxu0 0.0
        %2387 = vmatprep.subr.mxu0 0.0
        %2388 = vmatpush1.msra.mxu0 0.0
        %2389 = vmatprep.subr.mxu0 0.0
        %2390 = vmatpush1.msra.mxu0 0.0
        %2391 = vmatprep.subr.mxu0 0.0
        %2392 = vmatpush1.msra.mxu0 0.0
        %2393 = vmatprep.subr.mxu0 0.0
        %2394 = vmatpush1.msra.mxu0 0.0
        %2395 = vmatprep.subr.mxu0 0.0
        %2396 = vmatpush1.msra.mxu0 0.0
        %2397 = vmatprep.subr.mxu0 0.0
        %2398 = vmatpush1.msra.mxu0 0.0
        %2399 = vmatprep.subr.mxu0 0.0
        %2400 = vmatpush1.msra.mxu0 0.0
        %2401 = vmatprep.subr.mxu0 0.0
        %2402 = vmatpush1.msra.mxu0 0.0
        %2403 = vmatprep.subr.mxu0 0.0
        %2404 = vmatpush1.msra.mxu0 0.0
        %2405 = vmatprep.subr.mxu0 0.0
        %2406 = vmatpush1.msra.mxu0 0.0
        %2407 = vmatprep.subr.mxu0 0.0
        %2408 = vmatpush1.msra.mxu0 0.0
        %2409 = vmatprep.subr.mxu0 0.0
        %2410 = vmatpush1.msra.mxu0 0.0
        %2411 = vmatprep.subr.mxu0 0.0
        %2412 = vmatpush1.msra.mxu0 0.0
        %2413 = vmatprep.subr.mxu0 0.0
        %2414 = vmatpush1.msra.mxu0 0.0
        %2415 = vmatprep.subr.mxu0 0.0
        %2416 = vmatpush1.msra.mxu0 0.0
        %2417 = vmatprep.subr.mxu0 0.0
        %2418 = vmatpush1.msra.mxu0 0.0
        %2419 = vmatprep.subr.mxu0 0.0
        %2420 = vmatpush1.msra.mxu0 0.0
        %2421 = vmatprep.subr.mxu0 0.0
        %2422 = vmatpush1.msra.mxu0 0.0
        %2423 = vmatprep.subr.mxu0 0.0
        %2424 = vmatpush1.msra.mxu0 0.0
        %2425 = vmatprep.subr.mxu0 0.0
        %2426 = vmatpush1.msra.mxu0 0.0
        %2427 = vmatprep.subr.mxu0 0.0
        %2428 = vmatpush1.msra.mxu0 0.0
        %2429 = vmatprep.subr.mxu0 0.0
        %2430 = vmatpush1.msra.mxu0 0.0
        %2431 = vmatprep.subr.mxu0 0.0
        %2432 = vmatpush1.msra.mxu0 0.0
        %2433 = vmatprep.subr.mxu0 0.0
        %2434 = vmatpush1.msra.mxu0 0.0
        %2435 = vmatprep.subr.mxu0 0.0
        %2436 = vmatpush1.msra.mxu0 0.0
        %2437 = vmatprep.subr.mxu0 0.0
        %2438 = vmatpush1.msra.mxu0 0.0
        %2439 = vmatprep.subr.mxu0 0.0
        %2440 = vmatpush1.msra.mxu0 0.0
        %2441 = vmatprep.subr.mxu0 0.0
        %2442 = vmatpush1.msra.mxu0 0.0
        %2443 = vmatprep.subr.mxu0 0.0
        %2444 = vmatpush1.msra.mxu0 0.0
        %2445 = vmatprep.mubr.f32.mxu0 0.0
        %2446 = vmatmul.mubr.f32.gmra.mrb[0].mxu0 %v2379
        %v2447 = vpop.f32.mrb[0].mxu0
        %v2448 = vadd.f32 %v2376, %v2447
        %v2449 = vpop.f32.mrb[0].mxu0
        %2450 = vdwg.mxu0
        %vm2451 = vcmask 257024
        %2452 = vst.msk [vmem:[%s176] sm:$0xf] %vm2451, %v2448
        %s2453 = sand.u32 %s98, 1
        %s2454 = scalar_lea.sflag [#allocation3], %s2453
        %s2455 = sand.u32 %s98, 1
        %s2456 = smul.addr %s2455, 4
        %s2457 = scalar_lea.vmem [#allocation2], %s2456
        // Predicated region
        $region33: #{_lambda_.1} parent=31 // pred_check
          %p2458 = pneg %p108
        $region34: #{_lambda_.1} parent=31 // pred_check_branch
          %2460 = sbr.rel (%p2458) target = $region36
        $region35: #{_lambda_.1} parent=31 // pred_region
          %s2462 = ssub.s32 64, 64
          %2463 = vsyncadd %s2454, %s2462
          %s2464 = smul.addr %s17, 64
          %s2465 = scalar_lea.hbm %s3, %s2464
          %s2467 = sshll.u32 %s2457, 4
          %s2468 = int_to_ptr.vmem [resolvable:$true] %s2467
          %2470 = dma.vmem_to_hbm [thread:$0]  %s2468, 64, %s2465, %s2454
        $region36: #{_lambda_.1} parent=31 // pred_fallthru
          _
      $region32: #{_lambda_.1} parent=5 // pred_fallthru
        _
      %p2471 = scmp.le.s32.totalorder 2, %s12
      // Predicated region
      $region37: #{_lambda_.1} parent=5 // pred_check
        %p2472 = pneg %p2471
      $region38: #{_lambda_.1} parent=5 // pred_check_branch
        %2474 = sbr.rel (%p2472) target = $region40
      $region39: #{_lambda_.1} parent=5 // pred_region
        %s2475 = ssub.s32 %s12, 2
        // Predicated region
        $region41: #{_lambda_.1} parent=39 // pred_check
          %p2476 = pneg %p114
        $region42: #{_lambda_.1} parent=39 // pred_check_branch
          %2478 = sbr.rel (%p2476) target = $region44
        $region43: #{_lambda_.1} parent=39 // pred_region
          %s2479 = sand.u32 %s99, 1
          %s2480 = scalar_lea.sflag [#allocation3], %s2479
          %s2481 = sand.u32 %s99, 1
          %s2482 = smul.addr %s2481, 4
          %s2483 = scalar_lea.vmem [#allocation2], %s2482
          %2484 = dma.done %s2480, 64
        $region44: #{_lambda_.1} parent=39 // pred_fallthru
          _
      $region40: #{_lambda_.1} parent=5 // pred_fallthru
        _
    $region6: #{_lambda_.1} parent=1 // loop_footer
      %s16 = sadd.s32 1, %s12
    $region7: #{_lambda_.1} parent=1 // loop_footer_branch
      %11 = sbr.rel target = $region3
    $region8: #{_lambda_.1} parent=1 // loop_exit
      _
    %2485 = vsyncpa [#allocation3], 1
    %s2486 = scalar_lea.sflag [#allocation3], 1
    %2487 = vsyncpa %s2486, 1

</llo_original>
